<compile_context>
chip_gen: v5e
topology: v5e:2x2
jax: 0.10.0
libtpu: 0.0.40
codegen_flags: <defaults>
</compile_context>

<pallas_src>
from functools import partial

import jax
import jax.numpy as jnp
from jax.experimental import pallas as pl
from jax.experimental.pallas import tpu as pltpu


def _decoder_chunk_kernel(x_ref, h0_ref, w_cat_ref, b_gru_ref,
                          w_out_ref, b_out_ref,
                          logp_ref, h_out_ref,
                          h_carry, h_rows,
                          *, chunk_steps, seq_len):
    # x_ref:     [Tc, H]     relu'd embedded tokens for this chunk (f32)
    # h0_ref:    [1, H]      initial hidden state (f32)
    # w_cat_ref: [2H, 4H]    bf16 fused GRU weights (see module docstring)
    # b_gru_ref: [1, 4H]     f32  [b_ir+b_hr | b_iz+b_hz | b_in | b_hn]
    # w_out_ref: [H, O_pad]  bf16 output projection, zero-padded columns
    # b_out_ref: [1, O_pad]  f32, -1e30 in padded columns
    # logp_ref:  [Tc, O_pad] log-probs for this chunk (one row per step)
    # h_out_ref: [1, H]      final hidden state (written at last chunk)
    # h_carry:   [1, H]      VMEM hidden carry across chunks
    # h_rows:    [Tc, H]     VMEM per-chunk hidden rows for batched projection
    c = pl.program_id(0)
    H = h0_ref.shape[-1]

    @pl.when(c == 0)
    def _init():
        h_carry[...] = h0_ref[...]

    w_cat = w_cat_ref[...]                    # [2H, 4H] bf16 -> MXU directly
    b_gru = b_gru_ref[...]                    # [1, 4H]  f32

    def step(i, h):
        x_t = x_ref[pl.ds(i, 1), :]                                    # [1, H]
        xh = jnp.concatenate([x_t, h], axis=-1).astype(jnp.bfloat16)   # [1, 2H]
        # Single fused gate matmul (bf16 x bf16 -> f32 accumulate).
        g = jnp.dot(xh, w_cat, preferred_element_type=jnp.float32) + b_gru
        rz = jax.nn.sigmoid(g[:, :2 * H])
        r = rz[:, :H]
        z = rz[:, H:]
        n = jnp.tanh(g[:, 2 * H:3 * H] + r * g[:, 3 * H:])
        h_new = (1.0 - z) * n + z * h
        if seq_len % chunk_steps != 0:
            # Padded tail steps must not advance the recurrence.
            h_new = jnp.where(c * chunk_steps + i < seq_len, h_new, h)
        h_rows[pl.ds(i, 1), :] = h_new
        return h_new

    h_final = jax.lax.fori_loop(0, chunk_steps, step, h_carry[...], unroll=True)
    h_carry[...] = h_final

    # Deferred, batched output projection + stable log-softmax over the
    # lane-dense padded vocab.  Padded columns: zero weights + (-1e30) bias,
    # so they never win the max and exp underflows to exactly 0 in the LSE.
    hb = h_rows[...].astype(jnp.bfloat16)                              # [Tc, H]
    logits = jnp.dot(hb, w_out_ref[...],
                     preferred_element_type=jnp.float32) + b_out_ref[...]
    m = jnp.max(logits, axis=-1, keepdims=True)
    lse = jnp.log(jnp.sum(jnp.exp(logits - m), axis=-1, keepdims=True)) + m
    logp_ref[...] = logits - lse

    @pl.when(c == pl.num_programs(0) - 1)
    def _finalize():
        h_out_ref[...] = h_final


def make_decoder_params(hidden_size, output_size, key):
    """Synthetic parameters matching nn.Embedding / nn.GRU / nn.Linear shapes.

    GRU weights are stored transposed as (gate, in, out) with PyTorch gate
    order [r, z, n]; Linear weight is stored transposed as (in, out).
    """
    ks = jax.random.split(key, 7)
    H, O = hidden_size, output_size
    bound = 1.0 / jnp.sqrt(jnp.float32(H))
    u = lambda k, shape: jax.random.uniform(k, shape, jnp.float32, -bound, bound)
    return {
        "embedding": jax.random.normal(ks[0], (O, H), jnp.float32),
        "w_ih": u(ks[1], (3, H, H)),
        "w_hh": u(ks[2], (3, H, H)),
        "b_ih": u(ks[3], (3, H)),
        "b_hh": u(ks[4], (3, H)),
        "w_out": u(ks[5], (H, O)),
        "b_out": u(ks[6], (O,)),
    }


def build_fused_params(params, *, lane=128, weight_dtype=jnp.bfloat16):
    """Fuse/pack the per-gate params into the kernel's layout."""
    H = params["w_ih"].shape[-1]
    O = params["w_out"].shape[-1]
    O_pad = ((O + lane - 1) // lane) * lane

    zero = jnp.zeros((H, H), jnp.float32)
    # [2H, 4H]: rows 0:H take x, rows H:2H take h;
    # columns [r (ih;hh) | z (ih;hh) | n_input (ih;0) | n_hidden (0;hh)].
    w_cat = jnp.concatenate([
        jnp.concatenate([params["w_ih"][0], params["w_ih"][1],
                         params["w_ih"][2], zero], axis=1),
        jnp.concatenate([params["w_hh"][0], params["w_hh"][1],
                         zero, params["w_hh"][2]], axis=1),
    ], axis=0)

    # Single [1, 4H] bias row: r/z biases pre-summed, n biases kept separate
    # (the r * h_n gating needs b_hn on the hidden side only).
    b_gru = jnp.concatenate(
        [params["b_ih"][0] + params["b_hh"][0],
         params["b_ih"][1] + params["b_hh"][1],
         params["b_ih"][2],
         params["b_hh"][2]], axis=0).reshape(1, 4 * H).astype(jnp.float32)

    # Lane-dense (padded) output projection.
    w_out = jnp.zeros((H, O_pad), jnp.float32).at[:, :O].set(params["w_out"])
    b_out = jnp.full((1, O_pad), -1e30, jnp.float32).at[0, :O].set(params["b_out"])

    return {
        "w_cat": w_cat.astype(weight_dtype),
        "b_gru": b_gru,
        "w_out": w_out.astype(weight_dtype),
        "b_out": b_out,
        "H": H, "O": O, "O_pad": O_pad,
    }


def decoder_rnn_decode(tokens, hidden0, params, fused, *, chunk_steps=8):
    """Run T decoder steps in one pallas_call.

    tokens: int32 [T]; hidden0: [1, 1, H].
    Returns (logp [T, O], hidden [1, 1, H]).
    """
    T = int(tokens.shape[0])
    H, O, O_pad = fused["H"], fused["O"], fused["O_pad"]
    Tc = chunk_steps
    n_chunks = (T + Tc - 1) // Tc
    T_pad = n_chunks * Tc

    # One vectorized embedding gather + ReLU for the whole sequence.
    x_all = jnp.maximum(
        jnp.take(params["embedding"], tokens.astype(jnp.int32), axis=0), 0.0)
    if T_pad != T:
        x_all = jnp.concatenate(
            [x_all, jnp.zeros((T_pad - T, H), x_all.dtype)], axis=0)
    h0 = hidden0.reshape(1, H).astype(jnp.float32)

    def resident(shape):
        # Full-array block, constant block index -> loaded into VMEM once and
        # kept resident across all grid steps (no per-step DMA).
        return pl.BlockSpec(shape, lambda c, _n=len(shape): (0,) * _n)

    grid_spec = pltpu.PrefetchScalarGridSpec(
        num_scalar_prefetch=0,
        grid=(n_chunks,),
        in_specs=[
            pl.BlockSpec((Tc, H), lambda c: (c, 0)),   # x: streamed per chunk
            resident((1, H)),                          # h0
            resident(fused["w_cat"].shape),            # [2H, 4H]
            resident(fused["b_gru"].shape),            # [1, 4H]
            resident(fused["w_out"].shape),            # [H, O_pad]
            resident(fused["b_out"].shape),            # [1, O_pad]
        ],
        out_specs=(
            pl.BlockSpec((Tc, O_pad), lambda c: (c, 0)),  # logp, tiled over t
            resident((1, H)),                             # final hidden
        ),
        scratch_shapes=[
            pltpu.VMEM((1, H), jnp.float32),    # hidden carry across chunks
            pltpu.VMEM((Tc, H), jnp.float32),   # per-chunk hidden rows
        ],
    )

    kernel = partial(_decoder_chunk_kernel, chunk_steps=Tc, seq_len=T)
    logp_pad, h_out = pl.pallas_call(
        kernel,
        out_shape=(jax.ShapeDtypeStruct((T_pad, O_pad), jnp.float32),
                   jax.ShapeDtypeStruct((1, H), jnp.float32)),
        grid_spec=grid_spec,
        compiler_params=pltpu.CompilerParams(
            dimension_semantics=("arbitrary",),        # sequential hidden carry
            vmem_limit_bytes=32 * 1024 * 1024),
    )(x_all, h0, fused["w_cat"], fused["b_gru"], fused["w_out"], fused["b_out"])

    return logp_pad[:T, :O], h_out.reshape(1, 1, H)


def decoder_rnn_forward(token, hidden, params, fused, *, chunk_steps=8):
    """Single-step API matching DecoderRNN.forward(input, hidden)."""
    tokens = jnp.reshape(token, (1,)).astype(jnp.int32)
    logp, h_new = decoder_rnn_decode(tokens, hidden, params, fused,
                                     chunk_steps=chunk_steps)
    return logp, h_new


def _reference_decode(tokens, hidden0, params, weight_dtype=jnp.bfloat16):
    """Pure-JAX reference mirroring the PyTorch forward, stepped over tokens.

    Weights and dot-input activations get the same bf16 rounding the kernel
    uses (f32 accumulation), so the comparison only measures the kernel's
    numerics, not the quantization.
    """
    H = hidden0.shape[-1]
    wd = lambda a: a.astype(weight_dtype)
    w_ih, w_hh, w_out = wd(params["w_ih"]), wd(params["w_hh"]), wd(params["w_out"])
    b_ih, b_hh, b_out = params["b_ih"], params["b_hh"], params["b_out"]
    dot = lambda a, b: jnp.dot(a.astype(weight_dtype), b,
                               preferred_element_type=jnp.float32)
    h = hidden0.reshape(1, H).astype(jnp.float32)
    logps = []
    for t in range(tokens.shape[0]):
        x = jnp.maximum(params["embedding"][tokens[t]].reshape(1, H), 0.0)
        gi = [dot(x, w_ih[g]) + b_ih[g] for g in range(3)]
        gh = [dot(h, w_hh[g]) + b_hh[g] for g in range(3)]
        r = jax.nn.sigmoid(gi[0] + gh[0])
        z = jax.nn.sigmoid(gi[1] + gh[1])
        n = jnp.tanh(gi[2] + r * gh[2])
        h = (1.0 - z) * n + z * h
        logits = dot(h, w_out) + b_out.reshape(1, -1)
        logps.append(jax.nn.log_softmax(logits, axis=1))
    return jnp.concatenate(logps, axis=0), h.reshape(1, 1, H)


if __name__ == "__main__":
    hidden_size = 32
    output_size = 16     # vocab
    T = 16               # decode steps fused into one kernel launch
    Tc = 8               # recurrent steps per grid chunk

    key = jax.random.PRNGKey(0)
    k_params, k_tok = jax.random.split(key)
    params = make_decoder_params(hidden_size, output_size, k_params)
    fused = build_fused_params(params)

    tokens = jax.random.randint(k_tok, (T,), 0, output_size, dtype=jnp.int32)
    hidden0 = jnp.zeros((1, 1, hidden_size), jnp.float32)   # initHidden()

    # Multi-step fused decode (T steps, one pallas_call, T//Tc grid chunks).
    logp_seq, hidden_T = decoder_rnn_decode(tokens, hidden0, params, fused,
                                            chunk_steps=Tc)
    jax.block_until_ready((logp_seq, hidden_T))

    ref_logp, ref_hidden = _reference_decode(tokens, hidden0, params)
    assert logp_seq.shape == (T, output_size)
    assert hidden_T.shape == (1, 1, hidden_size)
    assert jnp.allclose(logp_seq, ref_logp, atol=2e-4, rtol=2e-4)
    assert jnp.allclose(hidden_T, ref_hidden, atol=2e-4, rtol=2e-4)

    # Single-step call matching the original module's forward(input, hidden);
    # also exercises the padded/masked tail path (T=1 padded to one Tc chunk).
    logp1, hidden1 = decoder_rnn_forward(tokens[:1], hidden0, params, fused,
                                         chunk_steps=Tc)
    jax.block_until_ready((logp1, hidden1))
    ref1_logp, ref1_hidden = _reference_decode(tokens[:1], hidden0, params)
    assert logp1.shape == (1, output_size) and hidden1.shape == (1, 1, hidden_size)
    assert jnp.allclose(logp1, ref1_logp, atol=2e-4, rtol=2e-4)
    assert jnp.allclose(hidden1, ref1_hidden, atol=2e-4, rtol=2e-4)

    print("KERNEL_OK")
</pallas_src>

<mosaic_0001>
module attributes {stable_mosaic.version = 11 : i64} {
  func.func @_decoder_chunk_kernel(%arg0: i32, %arg1: memref<8x32xf32, #tpu.memory_space<vmem>>, %arg2: memref<1x32xf32, #tpu.memory_space<vmem>>, %arg3: memref<64x128xbf16, #tpu.memory_space<vmem>>, %arg4: memref<1x128xf32, #tpu.memory_space<vmem>>, %arg5: memref<32x128xbf16, #tpu.memory_space<vmem>>, %arg6: memref<1x128xf32, #tpu.memory_space<vmem>>, %arg7: memref<8x128xf32, #tpu.memory_space<vmem>>, %arg8: memref<1x32xf32, #tpu.memory_space<vmem>>, %arg9: memref<1x32xf32, #tpu.memory_space<vmem>>, %arg10: memref<8x32xf32, #tpu.memory_space<vmem>>) attributes {dimension_semantics = [#tpu.dimension_semantics<arbitrary>], iteration_bounds = array<i64: 2>, scalar_prefetch = 0 : i64, scratch_operands = 2 : i64, tpu.core_type = #tpu.core_type<tc>, window_params = [{transform_indices = @transform_0, window_bounds = array<i64: 8, 32>}, {pipeline_mode = #tpu.pipeline_mode<synchronous>, transform_indices = @transform_1, window_bounds = array<i64: 1, 32>}, {pipeline_mode = #tpu.pipeline_mode<synchronous>, transform_indices = @transform_2, window_bounds = array<i64: 64, 128>}, {pipeline_mode = #tpu.pipeline_mode<synchronous>, transform_indices = @transform_3, window_bounds = array<i64: 1, 128>}, {pipeline_mode = #tpu.pipeline_mode<synchronous>, transform_indices = @transform_4, window_bounds = array<i64: 32, 128>}, {pipeline_mode = #tpu.pipeline_mode<synchronous>, transform_indices = @transform_5, window_bounds = array<i64: 1, 128>}, {transform_indices = @transform_6, window_bounds = array<i64: 8, 128>}, {pipeline_mode = #tpu.pipeline_mode<synchronous>, transform_indices = @transform_7, window_bounds = array<i64: 1, 32>}]} {
    %c0_i32 = arith.constant 0 : i32
    %0 = arith.cmpi eq, %arg0, %c0_i32 : i32
    %1 = arith.extui %0 : i1 to i32
    %c0_i32_0 = arith.constant 0 : i32
    %2 = arith.cmpi ne, %1, %c0_i32_0 : i32
    scf.if %2 {
      %c0_61 = arith.constant 0 : index
      %c0_62 = arith.constant 0 : index
      %237 = vector.load %arg2[%c0_61, %c0_62] : memref<1x32xf32, #tpu.memory_space<vmem>>, vector<1x32xf32>
      %c0_63 = arith.constant 0 : index
      %c0_64 = arith.constant 0 : index
      %238 = vector.load %arg9[%c0_63, %c0_64] : memref<1x32xf32, #tpu.memory_space<vmem>>, vector<1x32xf32>
      tpu.vector_store %arg9[%c0_63, %c0_64], %237 {strides = array<i32>} : memref<1x32xf32, #tpu.memory_space<vmem>>, vector<1x32xf32>,
    } else {
    }
    %c0 = arith.constant 0 : index
    %c0_1 = arith.constant 0 : index
    %3 = vector.load %arg3[%c0, %c0_1] : memref<64x128xbf16, #tpu.memory_space<vmem>>, vector<64x128xbf16>
    %c0_2 = arith.constant 0 : index
    %c0_3 = arith.constant 0 : index
    %4 = vector.load %arg4[%c0_2, %c0_3] : memref<1x128xf32, #tpu.memory_space<vmem>>, vector<1x128xf32>
    %c0_4 = arith.constant 0 : index
    %c0_5 = arith.constant 0 : index
    %5 = vector.load %arg9[%c0_4, %c0_5] : memref<1x32xf32, #tpu.memory_space<vmem>>, vector<1x32xf32>
    %c0_i32_6 = arith.constant 0 : i32
    %6 = arith.index_cast %c0_i32_6 : i32 to index
    %c0_7 = arith.constant 0 : index
    %7 = vector.load %arg1[%6, %c0_7] : memref<8x32xf32, #tpu.memory_space<vmem>>, vector<1x32xf32>
    %8 = tpu.concatenate %7, %5 in 1 : vector<1x32xf32>, vector<1x32xf32> -> vector<1x64xf32>
    %9 = arith.truncf %8 : vector<1x64xf32> to vector<1x64xbf16>
    %cst = arith.constant dense<0.000000e+00> : vector<1x128xf32>
    %10 = tpu.matmul %9, %3, %cst {dimension_numbers = #tpu.dot_dimension_numbers<[1], [0], [0], [1], [0, 0, 1, 1], [], []>} : vector<1x64xbf16>, vector<64x128xbf16>, vector<1x128xf32> -> vector<1x128xf32>
    %11 = arith.addf %10, %4 : vector<1x128xf32>
    %12 = vector.extract_strided_slice %11 {offsets = [0, 0], sizes = [1, 64], strides = [1, 1]} : vector<1x128xf32> to vector<1x64xf32>
    %13 = arith.negf %12 : vector<1x64xf32>
    %14 = math.exp %13 : vector<1x64xf32>
    %cst_8 = arith.constant 1.000000e+00 : f32
    %15 = vector.broadcast %cst_8 : f32 to vector<1x64xf32>
    %16 = arith.addf %15, %14 : vector<1x64xf32>
    %17 = arith.divf %15, %16 : vector<1x64xf32>
    %18 = vector.extract_strided_slice %17 {offsets = [0, 0], sizes = [1, 32], strides = [1, 1]} : vector<1x64xf32> to vector<1x32xf32>
    %19 = vector.extract_strided_slice %17 {offsets = [0, 32], sizes = [1, 32], strides = [1, 1]} : vector<1x64xf32> to vector<1x32xf32>
    %20 = vector.extract_strided_slice %11 {offsets = [0, 64], sizes = [1, 32], strides = [1, 1]} : vector<1x128xf32> to vector<1x32xf32>
    %21 = vector.extract_strided_slice %11 {offsets = [0, 96], sizes = [1, 32], strides = [1, 1]} : vector<1x128xf32> to vector<1x32xf32>
    %22 = arith.mulf %18, %21 : vector<1x32xf32>
    %23 = arith.addf %20, %22 : vector<1x32xf32>
    %24 = math.tanh %23 : vector<1x32xf32>
    %cst_9 = arith.constant 1.000000e+00 : f32
    %25 = vector.broadcast %cst_9 : f32 to vector<1x32xf32>
    %26 = arith.subf %25, %19 : vector<1x32xf32>
    %27 = arith.mulf %26, %24 : vector<1x32xf32>
    %28 = arith.mulf %19, %5 : vector<1x32xf32>
    %29 = arith.addf %27, %28 : vector<1x32xf32>
    %30 = arith.index_cast %c0_i32_6 : i32 to index
    %c0_10 = arith.constant 0 : index
    %31 = vector.load %arg10[%30, %c0_10] : memref<8x32xf32, #tpu.memory_space<vmem>>, vector<1x32xf32>
    tpu.vector_store %arg10[%30, %c0_10], %29 {strides = array<i32>} : memref<8x32xf32, #tpu.memory_space<vmem>>, vector<1x32xf32>,
    %c1_i32 = arith.constant 1 : i32
    %32 = arith.index_cast %c1_i32 : i32 to index
    %c0_11 = arith.constant 0 : index
    %33 = vector.load %arg1[%32, %c0_11] : memref<8x32xf32, #tpu.memory_space<vmem>>, vector<1x32xf32>
    %34 = tpu.concatenate %33, %29 in 1 : vector<1x32xf32>, vector<1x32xf32> -> vector<1x64xf32>
    %35 = arith.truncf %34 : vector<1x64xf32> to vector<1x64xbf16>
    %cst_12 = arith.constant dense<0.000000e+00> : vector<1x128xf32>
    %36 = tpu.matmul %35, %3, %cst_12 {dimension_numbers = #tpu.dot_dimension_numbers<[1], [0], [0], [1], [0, 0, 1, 1], [], []>} : vector<1x64xbf16>, vector<64x128xbf16>, vector<1x128xf32> -> vector<1x128xf32>
    %37 = arith.addf %36, %4 : vector<1x128xf32>
    %38 = vector.extract_strided_slice %37 {offsets = [0, 0], sizes = [1, 64], strides = [1, 1]} : vector<1x128xf32> to vector<1x64xf32>
    %39 = arith.negf %38 : vector<1x64xf32>
    %40 = math.exp %39 : vector<1x64xf32>
    %cst_13 = arith.constant 1.000000e+00 : f32
    %41 = vector.broadcast %cst_13 : f32 to vector<1x64xf32>
    %42 = arith.addf %41, %40 : vector<1x64xf32>
    %43 = arith.divf %41, %42 : vector<1x64xf32>
    %44 = vector.extract_strided_slice %43 {offsets = [0, 0], sizes = [1, 32], strides = [1, 1]} : vector<1x64xf32> to vector<1x32xf32>
    %45 = vector.extract_strided_slice %43 {offsets = [0, 32], sizes = [1, 32], strides = [1, 1]} : vector<1x64xf32> to vector<1x32xf32>
    %46 = vector.extract_strided_slice %37 {offsets = [0, 64], sizes = [1, 32], strides = [1, 1]} : vector<1x128xf32> to vector<1x32xf32>
    %47 = vector.extract_strided_slice %37 {offsets = [0, 96], sizes = [1, 32], strides = [1, 1]} : vector<1x128xf32> to vector<1x32xf32>
    %48 = arith.mulf %44, %47 : vector<1x32xf32>
    %49 = arith.addf %46, %48 : vector<1x32xf32>
    %50 = math.tanh %49 : vector<1x32xf32>
    %cst_14 = arith.constant 1.000000e+00 : f32
    %51 = vector.broadcast %cst_14 : f32 to vector<1x32xf32>
    %52 = arith.subf %51, %45 : vector<1x32xf32>
    %53 = arith.mulf %52, %50 : vector<1x32xf32>
    %54 = arith.mulf %45, %29 : vector<1x32xf32>
    %55 = arith.addf %53, %54 : vector<1x32xf32>
    %56 = arith.index_cast %c1_i32 : i32 to index
    %c0_15 = arith.constant 0 : index
    %57 = vector.load %arg10[%56, %c0_15] : memref<8x32xf32, #tpu.memory_space<vmem>>, vector<1x32xf32>
    tpu.vector_store %arg10[%56, %c0_15], %55 {strides = array<i32>} : memref<8x32xf32, #tpu.memory_space<vmem>>, vector<1x32xf32>,
    %c2_i32 = arith.constant 2 : i32
    %58 = arith.index_cast %c2_i32 : i32 to index
    %c0_16 = arith.constant 0 : index
    %59 = vector.load %arg1[%58, %c0_16] : memref<8x32xf32, #tpu.memory_space<vmem>>, vector<1x32xf32>
    %60 = tpu.concatenate %59, %55 in 1 : vector<1x32xf32>, vector<1x32xf32> -> vector<1x64xf32>
    %61 = arith.truncf %60 : vector<1x64xf32> to vector<1x64xbf16>
    %cst_17 = arith.constant dense<0.000000e+00> : vector<1x128xf32>
    %62 = tpu.matmul %61, %3, %cst_17 {dimension_numbers = #tpu.dot_dimension_numbers<[1], [0], [0], [1], [0, 0, 1, 1], [], []>} : vector<1x64xbf16>, vector<64x128xbf16>, vector<1x128xf32> -> vector<1x128xf32>
    %63 = arith.addf %62, %4 : vector<1x128xf32>
    %64 = vector.extract_strided_slice %63 {offsets = [0, 0], sizes = [1, 64], strides = [1, 1]} : vector<1x128xf32> to vector<1x64xf32>
    %65 = arith.negf %64 : vector<1x64xf32>
    %66 = math.exp %65 : vector<1x64xf32>
    %cst_18 = arith.constant 1.000000e+00 : f32
    %67 = vector.broadcast %cst_18 : f32 to vector<1x64xf32>
    %68 = arith.addf %67, %66 : vector<1x64xf32>
    %69 = arith.divf %67, %68 : vector<1x64xf32>
    %70 = vector.extract_strided_slice %69 {offsets = [0, 0], sizes = [1, 32], strides = [1, 1]} : vector<1x64xf32> to vector<1x32xf32>
    %71 = vector.extract_strided_slice %69 {offsets = [0, 32], sizes = [1, 32], strides = [1, 1]} : vector<1x64xf32> to vector<1x32xf32>
    %72 = vector.extract_strided_slice %63 {offsets = [0, 64], sizes = [1, 32], strides = [1, 1]} : vector<1x128xf32> to vector<1x32xf32>
    %73 = vector.extract_strided_slice %63 {offsets = [0, 96], sizes = [1, 32], strides = [1, 1]} : vector<1x128xf32> to vector<1x32xf32>
    %74 = arith.mulf %70, %73 : vector<1x32xf32>
    %75 = arith.addf %72, %74 : vector<1x32xf32>
    %76 = math.tanh %75 : vector<1x32xf32>
    %cst_19 = arith.constant 1.000000e+00 : f32
    %77 = vector.broadcast %cst_19 : f32 to vector<1x32xf32>
    %78 = arith.subf %77, %71 : vector<1x32xf32>
    %79 = arith.mulf %78, %76 : vector<1x32xf32>
    %80 = arith.mulf %71, %55 : vector<1x32xf32>
    %81 = arith.addf %79, %80 : vector<1x32xf32>
    %82 = arith.index_cast %c2_i32 : i32 to index
    %c0_20 = arith.constant 0 : index
    %83 = vector.load %arg10[%82, %c0_20] : memref<8x32xf32, #tpu.memory_space<vmem>>, vector<1x32xf32>
    tpu.vector_store %arg10[%82, %c0_20], %81 {strides = array<i32>} : memref<8x32xf32, #tpu.memory_space<vmem>>, vector<1x32xf32>,
    %c3_i32 = arith.constant 3 : i32
    %84 = arith.index_cast %c3_i32 : i32 to index
    %c0_21 = arith.constant 0 : index
    %85 = vector.load %arg1[%84, %c0_21] : memref<8x32xf32, #tpu.memory_space<vmem>>, vector<1x32xf32>
    %86 = tpu.concatenate %85, %81 in 1 : vector<1x32xf32>, vector<1x32xf32> -> vector<1x64xf32>
    %87 = arith.truncf %86 : vector<1x64xf32> to vector<1x64xbf16>
    %cst_22 = arith.constant dense<0.000000e+00> : vector<1x128xf32>
    %88 = tpu.matmul %87, %3, %cst_22 {dimension_numbers = #tpu.dot_dimension_numbers<[1], [0], [0], [1], [0, 0, 1, 1], [], []>} : vector<1x64xbf16>, vector<64x128xbf16>, vector<1x128xf32> -> vector<1x128xf32>
    %89 = arith.addf %88, %4 : vector<1x128xf32>
    %90 = vector.extract_strided_slice %89 {offsets = [0, 0], sizes = [1, 64], strides = [1, 1]} : vector<1x128xf32> to vector<1x64xf32>
    %91 = arith.negf %90 : vector<1x64xf32>
    %92 = math.exp %91 : vector<1x64xf32>
    %cst_23 = arith.constant 1.000000e+00 : f32
    %93 = vector.broadcast %cst_23 : f32 to vector<1x64xf32>
    %94 = arith.addf %93, %92 : vector<1x64xf32>
    %95 = arith.divf %93, %94 : vector<1x64xf32>
    %96 = vector.extract_strided_slice %95 {offsets = [0, 0], sizes = [1, 32], strides = [1, 1]} : vector<1x64xf32> to vector<1x32xf32>
    %97 = vector.extract_strided_slice %95 {offsets = [0, 32], sizes = [1, 32], strides = [1, 1]} : vector<1x64xf32> to vector<1x32xf32>
    %98 = vector.extract_strided_slice %89 {offsets = [0, 64], sizes = [1, 32], strides = [1, 1]} : vector<1x128xf32> to vector<1x32xf32>
    %99 = vector.extract_strided_slice %89 {offsets = [0, 96], sizes = [1, 32], strides = [1, 1]} : vector<1x128xf32> to vector<1x32xf32>
    %100 = arith.mulf %96, %99 : vector<1x32xf32>
    %101 = arith.addf %98, %100 : vector<1x32xf32>
    %102 = math.tanh %101 : vector<1x32xf32>
    %cst_24 = arith.constant 1.000000e+00 : f32
    %103 = vector.broadcast %cst_24 : f32 to vector<1x32xf32>
    %104 = arith.subf %103, %97 : vector<1x32xf32>
    %105 = arith.mulf %104, %102 : vector<1x32xf32>
    %106 = arith.mulf %97, %81 : vector<1x32xf32>
    %107 = arith.addf %105, %106 : vector<1x32xf32>
    %108 = arith.index_cast %c3_i32 : i32 to index
    %c0_25 = arith.constant 0 : index
    %109 = vector.load %arg10[%108, %c0_25] : memref<8x32xf32, #tpu.memory_space<vmem>>, vector<1x32xf32>
    tpu.vector_store %arg10[%108, %c0_25], %107 {strides = array<i32>} : memref<8x32xf32, #tpu.memory_space<vmem>>, vector<1x32xf32>,
    %c4_i32 = arith.constant 4 : i32
    %110 = arith.index_cast %c4_i32 : i32 to index
    %c0_26 = arith.constant 0 : index
    %111 = vector.load %arg1[%110, %c0_26] : memref<8x32xf32, #tpu.memory_space<vmem>>, vector<1x32xf32>
    %112 = tpu.concatenate %111, %107 in 1 : vector<1x32xf32>, vector<1x32xf32> -> vector<1x64xf32>
    %113 = arith.truncf %112 : vector<1x64xf32> to vector<1x64xbf16>
    %cst_27 = arith.constant dense<0.000000e+00> : vector<1x128xf32>
    %114 = tpu.matmul %113, %3, %cst_27 {dimension_numbers = #tpu.dot_dimension_numbers<[1], [0], [0], [1], [0, 0, 1, 1], [], []>} : vector<1x64xbf16>, vector<64x128xbf16>, vector<1x128xf32> -> vector<1x128xf32>
    %115 = arith.addf %114, %4 : vector<1x128xf32>
    %116 = vector.extract_strided_slice %115 {offsets = [0, 0], sizes = [1, 64], strides = [1, 1]} : vector<1x128xf32> to vector<1x64xf32>
    %117 = arith.negf %116 : vector<1x64xf32>
    %118 = math.exp %117 : vector<1x64xf32>
    %cst_28 = arith.constant 1.000000e+00 : f32
    %119 = vector.broadcast %cst_28 : f32 to vector<1x64xf32>
    %120 = arith.addf %119, %118 : vector<1x64xf32>
    %121 = arith.divf %119, %120 : vector<1x64xf32>
    %122 = vector.extract_strided_slice %121 {offsets = [0, 0], sizes = [1, 32], strides = [1, 1]} : vector<1x64xf32> to vector<1x32xf32>
    %123 = vector.extract_strided_slice %121 {offsets = [0, 32], sizes = [1, 32], strides = [1, 1]} : vector<1x64xf32> to vector<1x32xf32>
    %124 = vector.extract_strided_slice %115 {offsets = [0, 64], sizes = [1, 32], strides = [1, 1]} : vector<1x128xf32> to vector<1x32xf32>
    %125 = vector.extract_strided_slice %115 {offsets = [0, 96], sizes = [1, 32], strides = [1, 1]} : vector<1x128xf32> to vector<1x32xf32>
    %126 = arith.mulf %122, %125 : vector<1x32xf32>
    %127 = arith.addf %124, %126 : vector<1x32xf32>
    %128 = math.tanh %127 : vector<1x32xf32>
    %cst_29 = arith.constant 1.000000e+00 : f32
    %129 = vector.broadcast %cst_29 : f32 to vector<1x32xf32>
    %130 = arith.subf %129, %123 : vector<1x32xf32>
    %131 = arith.mulf %130, %128 : vector<1x32xf32>
    %132 = arith.mulf %123, %107 : vector<1x32xf32>
    %133 = arith.addf %131, %132 : vector<1x32xf32>
    %134 = arith.index_cast %c4_i32 : i32 to index
    %c0_30 = arith.constant 0 : index
    %135 = vector.load %arg10[%134, %c0_30] : memref<8x32xf32, #tpu.memory_space<vmem>>, vector<1x32xf32>
    tpu.vector_store %arg10[%134, %c0_30], %133 {strides = array<i32>} : memref<8x32xf32, #tpu.memory_space<vmem>>, vector<1x32xf32>,
    %c5_i32 = arith.constant 5 : i32
    %136 = arith.index_cast %c5_i32 : i32 to index
    %c0_31 = arith.constant 0 : index
    %137 = vector.load %arg1[%136, %c0_31] : memref<8x32xf32, #tpu.memory_space<vmem>>, vector<1x32xf32>
    %138 = tpu.concatenate %137, %133 in 1 : vector<1x32xf32>, vector<1x32xf32> -> vector<1x64xf32>
    %139 = arith.truncf %138 : vector<1x64xf32> to vector<1x64xbf16>
    %cst_32 = arith.constant dense<0.000000e+00> : vector<1x128xf32>
    %140 = tpu.matmul %139, %3, %cst_32 {dimension_numbers = #tpu.dot_dimension_numbers<[1], [0], [0], [1], [0, 0, 1, 1], [], []>} : vector<1x64xbf16>, vector<64x128xbf16>, vector<1x128xf32> -> vector<1x128xf32>
    %141 = arith.addf %140, %4 : vector<1x128xf32>
    %142 = vector.extract_strided_slice %141 {offsets = [0, 0], sizes = [1, 64], strides = [1, 1]} : vector<1x128xf32> to vector<1x64xf32>
    %143 = arith.negf %142 : vector<1x64xf32>
    %144 = math.exp %143 : vector<1x64xf32>
    %cst_33 = arith.constant 1.000000e+00 : f32
    %145 = vector.broadcast %cst_33 : f32 to vector<1x64xf32>
    %146 = arith.addf %145, %144 : vector<1x64xf32>
    %147 = arith.divf %145, %146 : vector<1x64xf32>
    %148 = vector.extract_strided_slice %147 {offsets = [0, 0], sizes = [1, 32], strides = [1, 1]} : vector<1x64xf32> to vector<1x32xf32>
    %149 = vector.extract_strided_slice %147 {offsets = [0, 32], sizes = [1, 32], strides = [1, 1]} : vector<1x64xf32> to vector<1x32xf32>
    %150 = vector.extract_strided_slice %141 {offsets = [0, 64], sizes = [1, 32], strides = [1, 1]} : vector<1x128xf32> to vector<1x32xf32>
    %151 = vector.extract_strided_slice %141 {offsets = [0, 96], sizes = [1, 32], strides = [1, 1]} : vector<1x128xf32> to vector<1x32xf32>
    %152 = arith.mulf %148, %151 : vector<1x32xf32>
    %153 = arith.addf %150, %152 : vector<1x32xf32>
    %154 = math.tanh %153 : vector<1x32xf32>
    %cst_34 = arith.constant 1.000000e+00 : f32
    %155 = vector.broadcast %cst_34 : f32 to vector<1x32xf32>
    %156 = arith.subf %155, %149 : vector<1x32xf32>
    %157 = arith.mulf %156, %154 : vector<1x32xf32>
    %158 = arith.mulf %149, %133 : vector<1x32xf32>
    %159 = arith.addf %157, %158 : vector<1x32xf32>
    %160 = arith.index_cast %c5_i32 : i32 to index
    %c0_35 = arith.constant 0 : index
    %161 = vector.load %arg10[%160, %c0_35] : memref<8x32xf32, #tpu.memory_space<vmem>>, vector<1x32xf32>
    tpu.vector_store %arg10[%160, %c0_35], %159 {strides = array<i32>} : memref<8x32xf32, #tpu.memory_space<vmem>>, vector<1x32xf32>,
    %c6_i32 = arith.constant 6 : i32
    %162 = arith.index_cast %c6_i32 : i32 to index
    %c0_36 = arith.constant 0 : index
    %163 = vector.load %arg1[%162, %c0_36] : memref<8x32xf32, #tpu.memory_space<vmem>>, vector<1x32xf32>
    %164 = tpu.concatenate %163, %159 in 1 : vector<1x32xf32>, vector<1x32xf32> -> vector<1x64xf32>
    %165 = arith.truncf %164 : vector<1x64xf32> to vector<1x64xbf16>
    %cst_37 = arith.constant dense<0.000000e+00> : vector<1x128xf32>
    %166 = tpu.matmul %165, %3, %cst_37 {dimension_numbers = #tpu.dot_dimension_numbers<[1], [0], [0], [1], [0, 0, 1, 1], [], []>} : vector<1x64xbf16>, vector<64x128xbf16>, vector<1x128xf32> -> vector<1x128xf32>
    %167 = arith.addf %166, %4 : vector<1x128xf32>
    %168 = vector.extract_strided_slice %167 {offsets = [0, 0], sizes = [1, 64], strides = [1, 1]} : vector<1x128xf32> to vector<1x64xf32>
    %169 = arith.negf %168 : vector<1x64xf32>
    %170 = math.exp %169 : vector<1x64xf32>
    %cst_38 = arith.constant 1.000000e+00 : f32
    %171 = vector.broadcast %cst_38 : f32 to vector<1x64xf32>
    %172 = arith.addf %171, %170 : vector<1x64xf32>
    %173 = arith.divf %171, %172 : vector<1x64xf32>
    %174 = vector.extract_strided_slice %173 {offsets = [0, 0], sizes = [1, 32], strides = [1, 1]} : vector<1x64xf32> to vector<1x32xf32>
    %175 = vector.extract_strided_slice %173 {offsets = [0, 32], sizes = [1, 32], strides = [1, 1]} : vector<1x64xf32> to vector<1x32xf32>
    %176 = vector.extract_strided_slice %167 {offsets = [0, 64], sizes = [1, 32], strides = [1, 1]} : vector<1x128xf32> to vector<1x32xf32>
    %177 = vector.extract_strided_slice %167 {offsets = [0, 96], sizes = [1, 32], strides = [1, 1]} : vector<1x128xf32> to vector<1x32xf32>
    %178 = arith.mulf %174, %177 : vector<1x32xf32>
    %179 = arith.addf %176, %178 : vector<1x32xf32>
    %180 = math.tanh %179 : vector<1x32xf32>
    %cst_39 = arith.constant 1.000000e+00 : f32
    %181 = vector.broadcast %cst_39 : f32 to vector<1x32xf32>
    %182 = arith.subf %181, %175 : vector<1x32xf32>
    %183 = arith.mulf %182, %180 : vector<1x32xf32>
    %184 = arith.mulf %175, %159 : vector<1x32xf32>
    %185 = arith.addf %183, %184 : vector<1x32xf32>
    %186 = arith.index_cast %c6_i32 : i32 to index
    %c0_40 = arith.constant 0 : index
    %187 = vector.load %arg10[%186, %c0_40] : memref<8x32xf32, #tpu.memory_space<vmem>>, vector<1x32xf32>
    tpu.vector_store %arg10[%186, %c0_40], %185 {strides = array<i32>} : memref<8x32xf32, #tpu.memory_space<vmem>>, vector<1x32xf32>,
    %c7_i32 = arith.constant 7 : i32
    %188 = arith.index_cast %c7_i32 : i32 to index
    %c0_41 = arith.constant 0 : index
    %189 = vector.load %arg1[%188, %c0_41] : memref<8x32xf32, #tpu.memory_space<vmem>>, vector<1x32xf32>
    %190 = tpu.concatenate %189, %185 in 1 : vector<1x32xf32>, vector<1x32xf32> -> vector<1x64xf32>
    %191 = arith.truncf %190 : vector<1x64xf32> to vector<1x64xbf16>
    %cst_42 = arith.constant dense<0.000000e+00> : vector<1x128xf32>
    %192 = tpu.matmul %191, %3, %cst_42 {dimension_numbers = #tpu.dot_dimension_numbers<[1], [0], [0], [1], [0, 0, 1, 1], [], []>} : vector<1x64xbf16>, vector<64x128xbf16>, vector<1x128xf32> -> vector<1x128xf32>
    %193 = arith.addf %192, %4 : vector<1x128xf32>
    %194 = vector.extract_strided_slice %193 {offsets = [0, 0], sizes = [1, 64], strides = [1, 1]} : vector<1x128xf32> to vector<1x64xf32>
    %195 = arith.negf %194 : vector<1x64xf32>
    %196 = math.exp %195 : vector<1x64xf32>
    %cst_43 = arith.constant 1.000000e+00 : f32
    %197 = vector.broadcast %cst_43 : f32 to vector<1x64xf32>
    %198 = arith.addf %197, %196 : vector<1x64xf32>
    %199 = arith.divf %197, %198 : vector<1x64xf32>
    %200 = vector.extract_strided_slice %199 {offsets = [0, 0], sizes = [1, 32], strides = [1, 1]} : vector<1x64xf32> to vector<1x32xf32>
    %201 = vector.extract_strided_slice %199 {offsets = [0, 32], sizes = [1, 32], strides = [1, 1]} : vector<1x64xf32> to vector<1x32xf32>
    %202 = vector.extract_strided_slice %193 {offsets = [0, 64], sizes = [1, 32], strides = [1, 1]} : vector<1x128xf32> to vector<1x32xf32>
    %203 = vector.extract_strided_slice %193 {offsets = [0, 96], sizes = [1, 32], strides = [1, 1]} : vector<1x128xf32> to vector<1x32xf32>
    %204 = arith.mulf %200, %203 : vector<1x32xf32>
    %205 = arith.addf %202, %204 : vector<1x32xf32>
    %206 = math.tanh %205 : vector<1x32xf32>
    %cst_44 = arith.constant 1.000000e+00 : f32
    %207 = vector.broadcast %cst_44 : f32 to vector<1x32xf32>
    %208 = arith.subf %207, %201 : vector<1x32xf32>
    %209 = arith.mulf %208, %206 : vector<1x32xf32>
    %210 = arith.mulf %201, %185 : vector<1x32xf32>
    %211 = arith.addf %209, %210 : vector<1x32xf32>
    %212 = arith.index_cast %c7_i32 : i32 to index
    %c0_45 = arith.constant 0 : index
    %213 = vector.load %arg10[%212, %c0_45] : memref<8x32xf32, #tpu.memory_space<vmem>>, vector<1x32xf32>
    tpu.vector_store %arg10[%212, %c0_45], %211 {strides = array<i32>} : memref<8x32xf32, #tpu.memory_space<vmem>>, vector<1x32xf32>,
    %c8_i32 = arith.constant 8 : i32
    %c0_46 = arith.constant 0 : index
    %c0_47 = arith.constant 0 : index
    %214 = vector.load %arg9[%c0_46, %c0_47] : memref<1x32xf32, #tpu.memory_space<vmem>>, vector<1x32xf32>
    tpu.vector_store %arg9[%c0_46, %c0_47], %211 {strides = array<i32>} : memref<1x32xf32, #tpu.memory_space<vmem>>, vector<1x32xf32>,
    %c0_48 = arith.constant 0 : index
    %c0_49 = arith.constant 0 : index
    %215 = vector.load %arg10[%c0_48, %c0_49] : memref<8x32xf32, #tpu.memory_space<vmem>>, vector<8x32xf32>
    %216 = arith.truncf %215 : vector<8x32xf32> to vector<8x32xbf16>
    %c0_50 = arith.constant 0 : index
    %c0_51 = arith.constant 0 : index
    %217 = vector.load %arg5[%c0_50, %c0_51] : memref<32x128xbf16, #tpu.memory_space<vmem>>, vector<32x128xbf16>
    %cst_52 = arith.constant dense<0.000000e+00> : vector<8x128xf32>
    %218 = tpu.matmul %216, %217, %cst_52 {dimension_numbers = #tpu.dot_dimension_numbers<[1], [0], [0], [1], [0, 0, 1, 1], [], []>} : vector<8x32xbf16>, vector<32x128xbf16>, vector<8x128xf32> -> vector<8x128xf32>
    %c0_53 = arith.constant 0 : index
    %c0_54 = arith.constant 0 : index
    %219 = vector.load %arg6[%c0_53, %c0_54] : memref<1x128xf32, #tpu.memory_space<vmem>>, vector<1x128xf32>
    %220 = vector.broadcast %219 : vector<1x128xf32> to vector<8x128xf32>
    %221 = arith.addf %218, %220 : vector<8x128xf32>
    %cst_55 = arith.constant dense<0xFF800000> : vector<8xf32>
    %222 = vector.multi_reduction <maximumf>, %221, %cst_55 [1] : vector<8x128xf32> to vector<8xf32>
    %223 = vector.shape_cast %222 : vector<8xf32> to vector<8x1xf32>
    %224 = vector.broadcast %223 : vector<8x1xf32> to vector<8x128xf32>
    %225 = arith.subf %221, %224 : vector<8x128xf32>
    %226 = math.exp %225 : vector<8x128xf32>
    %cst_56 = arith.constant dense<0.000000e+00> : vector<8xf32>
    %227 = vector.multi_reduction <add>, %226, %cst_56 [1] : vector<8x128xf32> to vector<8xf32>
    %228 = vector.shape_cast %227 : vector<8xf32> to vector<8x1xf32>
    %229 = math.log %228 : vector<8x1xf32>
    %230 = arith.addf %229, %223 : vector<8x1xf32>
    %231 = vector.broadcast %230 : vector<8x1xf32> to vector<8x128xf32>
    %232 = arith.subf %221, %231 : vector<8x128xf32>
    %c0_57 = arith.constant 0 : index
    %c0_58 = arith.constant 0 : index
    %233 = vector.load %arg7[%c0_57, %c0_58] : memref<8x128xf32, #tpu.memory_space<vmem>>, vector<8x128xf32>
    tpu.vector_store %arg7[%c0_57, %c0_58], %232 {strides = array<i32>} : memref<8x128xf32, #tpu.memory_space<vmem>>, vector<8x128xf32>,
    %c1_i32_59 = arith.constant 1 : i32
    %234 = arith.cmpi eq, %arg0, %c1_i32_59 : i32
    %235 = arith.extui %234 : i1 to i32
    %c0_i32_60 = arith.constant 0 : i32
    %236 = arith.cmpi ne, %235, %c0_i32_60 : i32
    scf.if %236 {
      %c0_61 = arith.constant 0 : index
      %c0_62 = arith.constant 0 : index
      %237 = vector.load %arg8[%c0_61, %c0_62] : memref<1x32xf32, #tpu.memory_space<vmem>>, vector<1x32xf32>
      tpu.vector_store %arg8[%c0_61, %c0_62], %211 {strides = array<i32>} : memref<1x32xf32, #tpu.memory_space<vmem>>, vector<1x32xf32>,
    } else {
    }
    return
  }
  func.func @transform_0(%arg0: i32) -> (i32, i32) {
    %c0_i32 = arith.constant 0 : i32
    %c0_i32_0 = arith.constant 0 : i32
    return %arg0, %c0_i32 : i32, i32
  }
  func.func @transform_1(%arg0: i32) -> (i32, i32) {
    %c0_i32 = arith.constant 0 : i32
    %c0_i32_0 = arith.constant 0 : i32
    %c0_i32_1 = arith.constant 0 : i32
    return %c0_i32, %c0_i32_0 : i32, i32
  }
  func.func @transform_2(%arg0: i32) -> (i32, i32) {
    %c0_i32 = arith.constant 0 : i32
    %c0_i32_0 = arith.constant 0 : i32
    %c0_i32_1 = arith.constant 0 : i32
    return %c0_i32, %c0_i32_0 : i32, i32
  }
  func.func @transform_3(%arg0: i32) -> (i32, i32) {
    %c0_i32 = arith.constant 0 : i32
    %c0_i32_0 = arith.constant 0 : i32
    %c0_i32_1 = arith.constant 0 : i32
    return %c0_i32, %c0_i32_0 : i32, i32
  }
  func.func @transform_4(%arg0: i32) -> (i32, i32) {
    %c0_i32 = arith.constant 0 : i32
    %c0_i32_0 = arith.constant 0 : i32
    %c0_i32_1 = arith.constant 0 : i32
    return %c0_i32, %c0_i32_0 : i32, i32
  }
  func.func @transform_5(%arg0: i32) -> (i32, i32) {
    %c0_i32 = arith.constant 0 : i32
    %c0_i32_0 = arith.constant 0 : i32
    %c0_i32_1 = arith.constant 0 : i32
    return %c0_i32, %c0_i32_0 : i32, i32
  }
  func.func @transform_6(%arg0: i32) -> (i32, i32) {
    %c0_i32 = arith.constant 0 : i32
    %c0_i32_0 = arith.constant 0 : i32
    return %arg0, %c0_i32 : i32, i32
  }
  func.func @transform_7(%arg0: i32) -> (i32, i32) {
    %c0_i32 = arith.constant 0 : i32
    %c0_i32_0 = arith.constant 0 : i32
    %c0_i32_1 = arith.constant 0 : i32
    return %c0_i32, %c0_i32_0 : i32, i32
  }
}

</mosaic_0001>

<llo_original>
// kernel: tpu_custom_call.1
$region0: #{tpu_custom_call.1}
  #allocation0 [shape = 'u32[]', space=smem, size = 0x4, offset = 0x4, fixed_abs, tag = 'smem constant byte address 0x4 - core index']
  #allocation1 [shape = 'u32[72,128]{1,0:T(1,128)}', space=vmem, size = 0x9000, scoped, tag = 'internal scratch']
  #allocation2 [shape = 'f32[1,32]{1,0:T(1,128)}', space=vmem, size = 0x200, scoped, tag = 'scratch operand']
  #allocation3 [shape = 'f32[8,32]{1,0:T(8,128)}', space=vmem, size = 0x1000, scoped, tag = 'scratch operand']
  %s0 = inlined_call_operand.hbm [shape: f32[16,32], index: 0, kind: input, shape index: {}]
  %s1 = inlined_call_operand.hbm [shape: f32[1,32], index: 1, kind: input, shape index: {}]
  %s2 = inlined_call_operand.hbm [shape: bf16[64,128], index: 2, kind: input, shape index: {}]
  %s3 = inlined_call_operand.vmem [shape: f32[1,128], index: 3, kind: input, shape index: {}]
  %s4 = inlined_call_operand.hbm [shape: bf16[32,128], index: 4, kind: input, shape index: {}]
  %s5 = inlined_call_operand.vmem [shape: f32[1,128], index: 5, kind: input, shape index: {}]
  %s6 = inlined_call_operand.hbm [shape: f32[16,128], index: 6, kind: output, shape index: {0}]
  %s7 = inlined_call_operand.hbm [shape: f32[1,32], index: 7, kind: output, shape index: {1}]
  %8 = xla_tuple %s6, %s7
  %s9 = sld [smem:[#allocation0]]
  $region89: #{tpu_custom_call.1} parent=0
    _
  %s11 = ssub.s32 1, %s9
  %s12 = scalar_select 0, %s11, %s9
  $region1: #{tpu_custom_call.1} parent=0
    #allocation4 [shape = 'u8[8192]{0}', space=vmem, size = 0x2000, scoped, tag = 'input window, operand 0']
    #allocation5 [shape = 's32[2]{0}', space=sflag, size = 0x8, scoped, tag = 'scoped memory for tpu_custom_call.1']
    #allocation6 [shape = 's32[2]{0}', space=sflag, size = 0x8, scoped, tag = 'scoped memory for tpu_custom_call.1']
    #allocation7 [shape = 'u8[512]{0}', space=vmem, size = 0x400, scoped, tag = 'input window, operand 1, single buffered']
    #allocation8 [shape = 's32[1]{0}', space=sflag, size = 0x4, scoped, tag = 'scoped memory for tpu_custom_call.1']
    #allocation9 [shape = 'u8[16384]{0}', space=vmem, size = 0x4000, scoped, tag = 'input window, operand 2, single buffered']
    #allocation10 [shape = 'u8[8192]{0}', space=vmem, size = 0x2000, scoped, tag = 'input window, operand 4, single buffered']
    #allocation11 [shape = 's32[1]{0}', space=sflag, size = 0x4, scoped, tag = 'scoped memory for tpu_custom_call.1']
    #allocation12 [shape = 'u8[8192]{0}', space=vmem, size = 0x2000, scoped, tag = 'output window, operand 0']
    #allocation13 [shape = 'u8[512]{0}', space=vmem, size = 0x400, scoped, tag = 'output window, operand 1, single buffered']
    #allocation14 [shape = 's32[1]{0}', space=sflag, size = 0x4, scoped, tag = 'scoped memory for tpu_custom_call.1']
    %13 = vsyncpa [#allocation5], 0
    %s14 = scalar_lea.sflag [#allocation5], 1
    %15 = vsyncpa %s14, 0
    %16 = vsyncpa [#allocation8], 0
    %17 = vsyncpa [#allocation11], 0
    %18 = vsyncpa [#allocation6], 0
    %s19 = scalar_lea.sflag [#allocation6], 1
    %20 = vsyncpa %s19, 0
    %21 = vsyncpa [#allocation14], 0
    loop: start=0, step=1, limit=4
    $region2: #{tpu_custom_call.1} parent=1 // loop_pre_header
      _
    $region3: #{tpu_custom_call.1} parent=1 // loop_header
      %s23 = sphi 0, %s27
      %p24 = scmp.ge.s32.totalorder %s23, 4
      %s33 = sphi 0, %s35
      %s36 = sphi 0, %s33
      %s37 = sphi 0, %s36
      %s53 = sphi 0, %s37
      %s57 = sphi 0, %s57
      %s59 = sphi 0, %s57
      %s60 = sphi 0, %s59
      %s74 = sphi 0, %s60
      %s78 = sphi 0, %s78
      %s80 = sphi 0, %s78
      %s81 = sphi 0, %s80
      %s95 = sphi 0, %s81
      %s99 = sphi 0, %s99
      %s101 = sphi 0, %s99
      %s102 = sphi 0, %s101
      %s116 = sphi 0, %s102
      %s120 = sphi 0, %s120
      %s122 = sphi 0, %s120
      %s123 = sphi 0, %s122
      %s137 = sphi 0, %s123
      %s141 = sphi 0, %s141
      %s143 = sphi 0, %s141
      %s144 = sphi 0, %s143
      %s158 = sphi 0, %s144
      %s164 = sphi 0, %s166
      %s167 = sphi 0, %s164
      %s168 = sphi 0, %s167
      %s184 = sphi 0, %s168
      %s188 = sphi 0, %s188
      %s190 = sphi 0, %s188
      %s191 = sphi 0, %s190
      %s205 = sphi 0, %s191
    $region4: #{tpu_custom_call.1} parent=1 // loop_header_branch
      %26 = sbr.rel (%p24) target = $region8
    $region5: #{tpu_custom_call.1} parent=1 // loop_body
      %s28 = ssub.s32 %s23, 1
      %s29 = ssub.s32 %s23, 2
      %s30 = sadd.s32 %s23, 1
      %s31 = ssub.s32 %s23, %s30
      %p32 = scmp.eq.s32.totalorder %s31, 0
      %s34 = sadd.s32 %s33, 1
      %s35 = scalar_select %p32, %s33, %s34
      %p38 = pneg %p32
      %p39 = scmp.eq.s32.totalorder %s23, 1
      %p40 = por %p38, %p39
      %p41 = scmp.ne.s32.totalorder %s33, %s36
      %p42 = scmp.eq.s32.totalorder %s23, 0
      %p43 = por %p41, %p42
      %p44 = scmp.ne.s32.totalorder %s33, %s36
      %p45 = scmp.eq.s32.totalorder %s28, 1
      %p46 = por %p44, %p45
      %p47 = scmp.ne.s32.totalorder %s36, %s37
      %p48 = scmp.eq.s32.totalorder %s28, 0
      %p49 = por %p47, %p48
      %p50 = scmp.ne.s32.totalorder %s36, %s37
      %p51 = scmp.eq.s32.totalorder %s29, 1
      %p52 = por %p50, %p51
      %p54 = scmp.ne.s32.totalorder %s37, %s53
      %p55 = scmp.eq.s32.totalorder %s29, 0
      %p56 = por %p54, %p55
      %s58 = sadd.s32 %s57, 1
      %p61 = scmp.eq.s32.totalorder %s23, 1
      %p62 = scmp.ne.s32.totalorder %s57, %s59
      %p63 = scmp.eq.s32.totalorder %s23, 0
      %p64 = por %p62, %p63
      %p65 = scmp.ne.s32.totalorder %s57, %s59
      %p66 = scmp.eq.s32.totalorder %s28, 1
      %p67 = por %p65, %p66
      %p68 = scmp.ne.s32.totalorder %s59, %s60
      %p69 = scmp.eq.s32.totalorder %s28, 0
      %p70 = por %p68, %p69
      %p71 = scmp.ne.s32.totalorder %s59, %s60
      %p72 = scmp.eq.s32.totalorder %s29, 1
      %p73 = por %p71, %p72
      %p75 = scmp.ne.s32.totalorder %s60, %s74
      %p76 = scmp.eq.s32.totalorder %s29, 0
      %p77 = por %p75, %p76
      %s79 = sadd.s32 %s78, 1
      %p82 = scmp.eq.s32.totalorder %s23, 1
      %p83 = scmp.ne.s32.totalorder %s78, %s80
      %p84 = scmp.eq.s32.totalorder %s23, 0
      %p85 = por %p83, %p84
      %p86 = scmp.ne.s32.totalorder %s78, %s80
      %p87 = scmp.eq.s32.totalorder %s28, 1
      %p88 = por %p86, %p87
      %p89 = scmp.ne.s32.totalorder %s80, %s81
      %p90 = scmp.eq.s32.totalorder %s28, 0
      %p91 = por %p89, %p90
      %p92 = scmp.ne.s32.totalorder %s80, %s81
      %p93 = scmp.eq.s32.totalorder %s29, 1
      %p94 = por %p92, %p93
      %p96 = scmp.ne.s32.totalorder %s81, %s95
      %p97 = scmp.eq.s32.totalorder %s29, 0
      %p98 = por %p96, %p97
      %s100 = sadd.s32 %s99, 1
      %p103 = scmp.eq.s32.totalorder %s23, 1
      %p104 = scmp.ne.s32.totalorder %s99, %s101
      %p105 = scmp.eq.s32.totalorder %s23, 0
      %p106 = por %p104, %p105
      %p107 = scmp.ne.s32.totalorder %s99, %s101
      %p108 = scmp.eq.s32.totalorder %s28, 1
      %p109 = por %p107, %p108
      %p110 = scmp.ne.s32.totalorder %s101, %s102
      %p111 = scmp.eq.s32.totalorder %s28, 0
      %p112 = por %p110, %p111
      %p113 = scmp.ne.s32.totalorder %s101, %s102
      %p114 = scmp.eq.s32.totalorder %s29, 1
      %p115 = por %p113, %p114
      %p117 = scmp.ne.s32.totalorder %s102, %s116
      %p118 = scmp.eq.s32.totalorder %s29, 0
      %p119 = por %p117, %p118
      %s121 = sadd.s32 %s120, 1
      %p124 = scmp.eq.s32.totalorder %s23, 1
      %p125 = scmp.ne.s32.totalorder %s120, %s122
      %p126 = scmp.eq.s32.totalorder %s23, 0
      %p127 = por %p125, %p126
      %p128 = scmp.ne.s32.totalorder %s120, %s122
      %p129 = scmp.eq.s32.totalorder %s28, 1
      %p130 = por %p128, %p129
      %p131 = scmp.ne.s32.totalorder %s122, %s123
      %p132 = scmp.eq.s32.totalorder %s28, 0
      %p133 = por %p131, %p132
      %p134 = scmp.ne.s32.totalorder %s122, %s123
      %p135 = scmp.eq.s32.totalorder %s29, 1
      %p136 = por %p134, %p135
      %p138 = scmp.ne.s32.totalorder %s123, %s137
      %p139 = scmp.eq.s32.totalorder %s29, 0
      %p140 = por %p138, %p139
      %s142 = sadd.s32 %s141, 1
      %p145 = scmp.eq.s32.totalorder %s23, 1
      %p146 = scmp.ne.s32.totalorder %s141, %s143
      %p147 = scmp.eq.s32.totalorder %s23, 0
      %p148 = por %p146, %p147
      %p149 = scmp.ne.s32.totalorder %s141, %s143
      %p150 = scmp.eq.s32.totalorder %s28, 1
      %p151 = por %p149, %p150
      %p152 = scmp.ne.s32.totalorder %s143, %s144
      %p153 = scmp.eq.s32.totalorder %s28, 0
      %p154 = por %p152, %p153
      %p155 = scmp.ne.s32.totalorder %s143, %s144
      %p156 = scmp.eq.s32.totalorder %s29, 1
      %p157 = por %p155, %p156
      %p159 = scmp.ne.s32.totalorder %s144, %s158
      %p160 = scmp.eq.s32.totalorder %s29, 0
      %p161 = por %p159, %p160
      %s162 = ssub.s32 %s23, %s30
      %p163 = scmp.eq.s32.totalorder %s162, 0
      %s165 = sadd.s32 %s164, 1
      %s166 = scalar_select %p163, %s164, %s165
      %p169 = pneg %p163
      %p170 = scmp.eq.s32.totalorder %s23, 1
      %p171 = por %p169, %p170
      %p172 = scmp.ne.s32.totalorder %s164, %s167
      %p173 = scmp.eq.s32.totalorder %s23, 0
      %p174 = por %p172, %p173
      %p175 = scmp.ne.s32.totalorder %s164, %s167
      %p176 = scmp.eq.s32.totalorder %s28, 1
      %p177 = por %p175, %p176
      %p178 = scmp.ne.s32.totalorder %s167, %s168
      %p179 = scmp.eq.s32.totalorder %s28, 0
      %p180 = por %p178, %p179
      %p181 = scmp.ne.s32.totalorder %s167, %s168
      %p182 = scmp.eq.s32.totalorder %s29, 1
      %p183 = por %p181, %p182
      %p185 = scmp.ne.s32.totalorder %s168, %s184
      %p186 = scmp.eq.s32.totalorder %s29, 0
      %p187 = por %p185, %p186
      %s189 = sadd.s32 %s188, 1
      %p192 = scmp.eq.s32.totalorder %s23, 1
      %p193 = scmp.ne.s32.totalorder %s188, %s190
      %p194 = scmp.eq.s32.totalorder %s23, 0
      %p195 = por %p193, %p194
      %p196 = scmp.ne.s32.totalorder %s188, %s190
      %p197 = scmp.eq.s32.totalorder %s28, 1
      %p198 = por %p196, %p197
      %p199 = scmp.ne.s32.totalorder %s190, %s191
      %p200 = scmp.eq.s32.totalorder %s28, 0
      %p201 = por %p199, %p200
      %p202 = scmp.ne.s32.totalorder %s190, %s191
      %p203 = scmp.eq.s32.totalorder %s29, 1
      %p204 = por %p202, %p203
      %p206 = scmp.ne.s32.totalorder %s191, %s205
      %p207 = scmp.eq.s32.totalorder %s29, 0
      %p208 = por %p206, %p207
      %p209 = scmp.le.s32.totalorder 1, %s23
      %p210 = scmp.lt.s32.totalorder %s23, 3
      %p211 = pnand %p209, %p210
      %p212 = pneg %p211
      // Predicated region
      $region9: #{tpu_custom_call.1} parent=5 // pred_check
        _
      $region10: #{tpu_custom_call.1} parent=5 // pred_check_branch
        %214 = sbr.rel (%p211) target = $region12
      $region11: #{tpu_custom_call.1} parent=5 // pred_region
        %s215 = ssub.s32 %s23, 1
        // Predicated region
        $region13: #{tpu_custom_call.1} parent=11 // pred_check
          %p216 = pneg %p70
        $region14: #{tpu_custom_call.1} parent=11 // pred_check_branch
          %218 = sbr.rel (%p216) target = $region16
        $region15: #{tpu_custom_call.1} parent=11 // pred_region
          %220 = vsyncadd [#allocation8], 0
          %s222 = sshll.u32 %s1, 4
          %s223 = int_to_ptr.hbm [resolvable:$true] %s222
          %s224 = sshll.u32 [#allocation7], 4
          %s225 = int_to_ptr.vmem [resolvable:$true] %s224
          %227 = dma.hbm_to_vmem [thread:$0]  %s223, 16, %s225, [#allocation8]
        $region16: #{tpu_custom_call.1} parent=11 // pred_fallthru
          _
        // Predicated region
        $region17: #{tpu_custom_call.1} parent=11 // pred_check
          %p228 = pneg %p91
        $region18: #{tpu_custom_call.1} parent=11 // pred_check_branch
          %230 = sbr.rel (%p228) target = $region20
        $region19: #{tpu_custom_call.1} parent=11 // pred_region
          %232 = vsyncadd [#allocation8], 0
          %s233 = sshll.u32 %s2, 4
          %s234 = int_to_ptr.hbm [resolvable:$true] %s233
          %s235 = sshll.u32 [#allocation9], 4
          %s236 = int_to_ptr.vmem [resolvable:$true] %s235
          %241 = dma.hbm_to_vmem [thread:$0]  %s234, 512, %s236, [#allocation8], 64, 64, 4
        $region20: #{tpu_custom_call.1} parent=11 // pred_fallthru
          _
        // Predicated region
        $region21: #{tpu_custom_call.1} parent=11 // pred_check
          %p242 = pneg %p112
        $region22: #{tpu_custom_call.1} parent=11 // pred_check_branch
          %244 = sbr.rel (%p242) target = $region24
        $region23: #{tpu_custom_call.1} parent=11 // pred_region
          _
        $region24: #{tpu_custom_call.1} parent=11 // pred_fallthru
          _
        // Predicated region
        $region25: #{tpu_custom_call.1} parent=11 // pred_check
          %p245 = pneg %p133
        $region26: #{tpu_custom_call.1} parent=11 // pred_check_branch
          %247 = sbr.rel (%p245) target = $region28
        $region27: #{tpu_custom_call.1} parent=11 // pred_region
          %249 = vsyncadd [#allocation11], 0
          %s250 = sshll.u32 %s4, 4
          %s251 = int_to_ptr.hbm [resolvable:$true] %s250
          %s252 = sshll.u32 [#allocation10], 4
          %s253 = int_to_ptr.vmem [resolvable:$true] %s252
          %258 = dma.hbm_to_vmem [thread:$0]  %s251, 256, %s253, [#allocation11], 64, 64, 4
        $region28: #{tpu_custom_call.1} parent=11 // pred_fallthru
          _
        // Predicated region
        $region29: #{tpu_custom_call.1} parent=11 // pred_check
          %p259 = pneg %p154
        $region30: #{tpu_custom_call.1} parent=11 // pred_check_branch
          %261 = sbr.rel (%p259) target = $region32
        $region31: #{tpu_custom_call.1} parent=11 // pred_region
          _
        $region32: #{tpu_custom_call.1} parent=11 // pred_fallthru
          _
      $region12: #{tpu_custom_call.1} parent=5 // pred_fallthru
        _
      %p262 = scmp.lt.s32.totalorder %s23, 2
      // Predicated region
      $region33: #{tpu_custom_call.1} parent=5 // pred_check
        %p263 = pneg %p262
      $region34: #{tpu_custom_call.1} parent=5 // pred_check_branch
        %265 = sbr.rel (%p263) target = $region36
      $region35: #{tpu_custom_call.1} parent=5 // pred_region
        // Predicated region
        $region37: #{tpu_custom_call.1} parent=35 // pred_check
          %p266 = pneg %p43
        $region38: #{tpu_custom_call.1} parent=35 // pred_check_branch
          %268 = sbr.rel (%p266) target = $region40
        $region39: #{tpu_custom_call.1} parent=35 // pred_region
          %s269 = sand.u32 %s33, 1
          %s270 = scalar_lea.sflag [#allocation5], %s269
          %s271 = sand.u32 %s33, 1
          %s272 = smul.addr %s271, 8
          %s273 = scalar_lea.vmem [#allocation4], %s272
          %275 = vsyncadd %s270, 0
          %s276 = smul.addr %s23, 8
          %s277 = scalar_lea.hbm %s0, %s276
          %s279 = sshll.u32 %s277, 4
          %s280 = int_to_ptr.hbm [resolvable:$true] %s279
          %s281 = sshll.u32 %s273, 4
          %s282 = int_to_ptr.vmem [resolvable:$true] %s281
          %284 = dma.hbm_to_vmem [thread:$0]  %s280, 128, %s282, %s270
        $region40: #{tpu_custom_call.1} parent=35 // pred_fallthru
          _
      $region36: #{tpu_custom_call.1} parent=5 // pred_fallthru
        _
      %p285 = scmp.le.s32.totalorder 1, %s23
      %p286 = scmp.lt.s32.totalorder %s23, 3
      %p287 = pnand %p285, %p286
      %p288 = pneg %p287
      // Predicated region
      $region41: #{tpu_custom_call.1} parent=5 // pred_check
        _
      $region42: #{tpu_custom_call.1} parent=5 // pred_check_branch
        %290 = sbr.rel (%p287) target = $region44
      $region43: #{tpu_custom_call.1} parent=5 // pred_region
        %s291 = ssub.s32 %s23, 1
        %s292 = sand.u32 %s36, 1
        %s293 = scalar_lea.sflag [#allocation5], %s292
        %s294 = sand.u32 %s36, 1
        %s295 = smul.addr %s294, 8
        %s296 = scalar_lea.vmem [#allocation4], %s295
        // Predicated region
        $region45: #{tpu_custom_call.1} parent=43 // pred_check
          %p297 = pneg %p49
        $region46: #{tpu_custom_call.1} parent=43 // pred_check_branch
          %299 = sbr.rel (%p297) target = $region48
        $region47: #{tpu_custom_call.1} parent=43 // pred_region
          %301 = dma.done %s293, 128
        $region48: #{tpu_custom_call.1} parent=43 // pred_fallthru
          _
        // Predicated region
        $region49: #{tpu_custom_call.1} parent=43 // pred_check
          %p302 = pneg %p70
        $region50: #{tpu_custom_call.1} parent=43 // pred_check_branch
          %304 = sbr.rel (%p302) target = $region52
        $region51: #{tpu_custom_call.1} parent=43 // pred_region
          %306 = dma.done [#allocation8], 16
        $region52: #{tpu_custom_call.1} parent=43 // pred_fallthru
          _
        // Predicated region
        $region53: #{tpu_custom_call.1} parent=43 // pred_check
          %p307 = pneg %p91
        $region54: #{tpu_custom_call.1} parent=43 // pred_check_branch
          %309 = sbr.rel (%p307) target = $region56
        $region55: #{tpu_custom_call.1} parent=43 // pred_region
          %311 = dma.done [#allocation8], 512
        $region56: #{tpu_custom_call.1} parent=43 // pred_fallthru
          _
        // Predicated region
        $region57: #{tpu_custom_call.1} parent=43 // pred_check
          %p312 = pneg %p133
        $region58: #{tpu_custom_call.1} parent=43 // pred_check_branch
          %314 = sbr.rel (%p312) target = $region60
        $region59: #{tpu_custom_call.1} parent=43 // pred_region
          %316 = dma.done [#allocation11], 256
        $region60: #{tpu_custom_call.1} parent=43 // pred_fallthru
          _
        %s317 = sand.u32 %s36, 1
        %s318 = scalar_lea.sflag [#allocation5], %s317
        %s319 = sand.u32 %s36, 1
        %s320 = smul.addr %s319, 8
        %s321 = scalar_lea.vmem [#allocation4], %s320
        %p322 = pneg %p49
        %p323 = pneg %p46
        %p324 = pneg %p70
        %p325 = pneg %p67
        %p326 = pneg %p91
        %p327 = pneg %p88
        %p328 = pneg %p112
        %p329 = pneg %p109
        %p330 = pneg %p133
        %p331 = pneg %p130
        %p332 = pneg %p154
        %p333 = pneg %p151
        %p334 = pneg %p180
        %p335 = pneg %p177
        %s336 = sand.u32 %s167, 1
        %s337 = scalar_lea.sflag [#allocation6], %s336
        %s338 = sand.u32 %s167, 1
        %s339 = smul.addr %s338, 8
        %s340 = scalar_lea.vmem [#allocation12], %s339
        %p341 = pneg %p201
        %p342 = pneg %p198
        %p344 = scmp.eq.s32.totalorder %s28, 0
        // Predicated region
        $region61: #{tpu_custom_call.1} parent=43 // pred_check
          %p345 = pneg %p344
        $region62: #{tpu_custom_call.1} parent=43 // pred_check_branch
          %347 = sbr.rel (%p345) target = $region64
        $region63: #{tpu_custom_call.1} parent=43 // pred_region
          %v348 = vld [vmem:[#allocation7] sm:$0x1]
          %vm349 = vcmask 253952
          %350 = vst.msk [vmem:[#allocation2] sm:$0x1] %vm349, %v348
        $region64: #{tpu_custom_call.1} parent=43 // pred_fallthru
          _
        %v351 = vld [vmem:[#allocation9] sm:$0xf]
        %v352 = vld [vmem:[#allocation9 + $0x4] sm:$0xf]
        %v353 = vld [vmem:[#allocation9 + $0x8] sm:$0xf]
        %v354 = vld [vmem:[#allocation9 + $0xc] sm:$0xf]
        %v355 = vld [vmem:[#allocation9 + $0x10] sm:$0xf]
        %v356 = vld [vmem:[#allocation9 + $0x14] sm:$0xf]
        %v357 = vld [vmem:[#allocation9 + $0x18] sm:$0xf]
        %v358 = vld [vmem:[#allocation9 + $0x1c] sm:$0xf]
        %v359 = vld [vmem:[%s3] sm:$0x1]
        %v360 = vld [vmem:[#allocation2] sm:$0x1]
        %v361 = vld [vmem:[%s296] sm:$0x1]
        %v363 = vperm.slane %v360, 0
        %364 = vrot.lane.b32.xlu0 %v363, 32
        %v365 = vpop.permute.xlu0 %364
        %vm367 = vcmask 261120
        %v368 = vsel %vm367, %v361, %v365
        %v369 = vpack.c.bf16 %v368, %v368
        %v378 = vunpack.c.l.b16 %v351
        %v379 = vunpack.c.l.b16 %v352
        %v380 = vunpack.c.l.b16 %v353
        %v381 = vunpack.c.l.b16 %v354
        %v382 = vunpack.c.l.b16 %v355
        %v383 = vunpack.c.l.b16 %v356
        %v384 = vunpack.c.l.b16 %v357
        %v385 = vunpack.c.l.b16 %v358
        %v386 = vpack.c.b16 %v379, %v378
        %v387 = vpack.c.b16 %v381, %v380
        %v388 = vpack.c.b16 %v383, %v382
        %v389 = vpack.c.b16 %v385, %v384
        %vm394 = vcmask 523264
        %v396 = vsel %vm394, %v369, 0
        %398 = vmatpush.bf16.msra.mxu0 0
        %399 = vmatpush.bf16.msra.mxu0 0
        %400 = vmatpush.bf16.msra.mxu0 0
        %401 = vmatpush.bf16.msra.mxu0 0
        %402 = vmatpush.bf16.msra.mxu0 %v389
        %403 = vmatpush.bf16.msra.mxu0 %v388
        %404 = vmatpush.bf16.msra.mxu0 %v387
        %405 = vmatpush.bf16.msra.mxu0 %v386
        %406 = vmatmul.bf16.gmra.mxu0 %v396
        %v407 = vpop.f32.mrf.mxu0
        %v408 = vadd.f32 %v359, %v407
        %v409 = vpop.f32.mrf.mxu0
        %410 = vdwg.mxu0
        %v411 = vxor.u32 %v408, 2147483648
        %v412 = vmul.f32 %v411, 1.442695
        %v413 = vpow.pop %v412
        %v414 = vadd.f32 %v413, 1.0
        %v415 = vrcp.pop %v414
        %v416 = vmul.f32 %v414, %v415
        %v417 = vsub.f32 1.0, %v416
        %v418 = vmul.f32 %v415, %v417
        %v419 = vadd.f32 %v415, %v418
        %vm420 = vweird.f32 %v414
        %vm421 = vweird.f32 %v415
        %vm422 = vmor %vm420, %vm421
        %v423 = vsel %vm422, %v415, %v419
        %v424 = vand.u32 2147483647, %v414
        %vm425 = vcmp.eq.f32.partialorder %v424, 8.507059e+37
        %v426 = vand.u32 %v414, 2147483648
        %v427 = vor.u32 1.1754944e-38, %v426
        %v428 = vsel %vm425, %v427, %v423
        %v429 = vmul.f32 1.0, %v428
        %431 = vrot.lane.b32.xlu0 %v408, 32
        %v432 = vpop.permute.xlu0 %431
        %v434 = vmul.f32 %v429, %v432
        %436 = vrot.lane.b32.xlu0 %v434, 64
        %v437 = vpop.permute.xlu0 %436
        %v439 = vadd.f32 %v408, %v437
        %v440 = vtanh.pop %v439
        %v441 = vsub.f32 1.0, %v429
        %443 = vrot.lane.b32.xlu0 %v440, 96
        %v444 = vpop.permute.xlu0 %443
        %v446 = vmul.f32 %v441, %v444
        %v447 = vmul.f32 %v429, %v365
        %v448 = vadd.f32 %v446, %v447
        %450 = vrot.lane.b32.xlu0 %v448, 96
        %v451 = vpop.permute.xlu0 %450
        %vm453 = vcmask 253952
        %454 = vst.msk [vmem:[#allocation3] sm:$0x1] %vm453, %v451
        %v455 = vld [vmem:[%s296 + $0x1] sm:$0x1]
        %v456 = vsel %vm367, %v455, %v448
        %v457 = vpack.c.bf16 %v456, %v456
        %v459 = vsel %vm394, %v457, 0
        %461 = vmatpush.bf16.msra.mxu0 0
        %462 = vmatpush.bf16.msra.mxu0 0
        %463 = vmatpush.bf16.msra.mxu0 0
        %464 = vmatpush.bf16.msra.mxu0 0
        %465 = vmatpush.bf16.msra.mxu0 %v389
        %466 = vmatpush.bf16.msra.mxu0 %v388
        %467 = vmatpush.bf16.msra.mxu0 %v387
        %468 = vmatpush.bf16.msra.mxu0 %v386
        %469 = vmatmul.bf16.gmra.mxu0 %v459
        %v470 = vpop.f32.mrf.mxu0
        %v471 = vadd.f32 %v359, %v470
        %v472 = vpop.f32.mrf.mxu0
        %473 = vdwg.mxu0
        %v474 = vxor.u32 %v471, 2147483648
        %v475 = vmul.f32 %v474, 1.442695
        %v476 = vpow.pop %v475
        %v477 = vadd.f32 %v476, 1.0
        %v478 = vrcp.pop %v477
        %v479 = vmul.f32 %v477, %v478
        %v480 = vsub.f32 1.0, %v479
        %v481 = vmul.f32 %v478, %v480
        %v482 = vadd.f32 %v478, %v481
        %vm483 = vweird.f32 %v477
        %vm484 = vweird.f32 %v478
        %vm485 = vmor %vm483, %vm484
        %v486 = vsel %vm485, %v478, %v482
        %v487 = vand.u32 2147483647, %v477
        %vm488 = vcmp.eq.f32.partialorder %v487, 8.507059e+37
        %v489 = vand.u32 %v477, 2147483648
        %v490 = vor.u32 1.1754944e-38, %v489
        %v491 = vsel %vm488, %v490, %v486
        %v492 = vmul.f32 1.0, %v491
        %494 = vrot.lane.b32.xlu0 %v471, 32
        %v495 = vpop.permute.xlu0 %494
        %v497 = vmul.f32 %v492, %v495
        %499 = vrot.lane.b32.xlu0 %v497, 64
        %v500 = vpop.permute.xlu0 %499
        %v502 = vadd.f32 %v471, %v500
        %v503 = vtanh.pop %v502
        %v504 = vsub.f32 1.0, %v492
        %506 = vrot.lane.b32.xlu0 %v503, 96
        %v507 = vpop.permute.xlu0 %506
        %v509 = vmul.f32 %v504, %v507
        %v510 = vmul.f32 %v492, %v448
        %v511 = vadd.f32 %v509, %v510
        %513 = vrot.lane.b32.xlu0 %v511, 96
        %v514 = vpop.permute.xlu0 %513
        %516 = vst.msk [vmem:[#allocation3 + $0x1] sm:$0x1] %vm453, %v514
        %v517 = vld [vmem:[%s296 + $0x2] sm:$0x1]
        %v518 = vsel %vm367, %v517, %v511
        %v519 = vpack.c.bf16 %v518, %v518
        %v521 = vsel %vm394, %v519, 0
        %523 = vmatpush.bf16.msra.mxu0 0
        %524 = vmatpush.bf16.msra.mxu0 0
        %525 = vmatpush.bf16.msra.mxu0 0
        %526 = vmatpush.bf16.msra.mxu0 0
        %527 = vmatpush.bf16.msra.mxu0 %v389
        %528 = vmatpush.bf16.msra.mxu0 %v388
        %529 = vmatpush.bf16.msra.mxu0 %v387
        %530 = vmatpush.bf16.msra.mxu0 %v386
        %531 = vmatmul.bf16.gmra.mxu0 %v521
        %v532 = vpop.f32.mrf.mxu0
        %v533 = vadd.f32 %v359, %v532
        %v534 = vpop.f32.mrf.mxu0
        %535 = vdwg.mxu0
        %v536 = vxor.u32 %v533, 2147483648
        %v537 = vmul.f32 %v536, 1.442695
        %v538 = vpow.pop %v537
        %v539 = vadd.f32 %v538, 1.0
        %v540 = vrcp.pop %v539
        %v541 = vmul.f32 %v539, %v540
        %v542 = vsub.f32 1.0, %v541
        %v543 = vmul.f32 %v540, %v542
        %v544 = vadd.f32 %v540, %v543
        %vm545 = vweird.f32 %v539
        %vm546 = vweird.f32 %v540
        %vm547 = vmor %vm545, %vm546
        %v548 = vsel %vm547, %v540, %v544
        %v549 = vand.u32 2147483647, %v539
        %vm550 = vcmp.eq.f32.partialorder %v549, 8.507059e+37
        %v551 = vand.u32 %v539, 2147483648
        %v552 = vor.u32 1.1754944e-38, %v551
        %v553 = vsel %vm550, %v552, %v548
        %v554 = vmul.f32 1.0, %v553
        %556 = vrot.lane.b32.xlu0 %v533, 32
        %v557 = vpop.permute.xlu0 %556
        %v559 = vmul.f32 %v554, %v557
        %561 = vrot.lane.b32.xlu0 %v559, 64
        %v562 = vpop.permute.xlu0 %561
        %v564 = vadd.f32 %v533, %v562
        %v565 = vtanh.pop %v564
        %v566 = vsub.f32 1.0, %v554
        %568 = vrot.lane.b32.xlu0 %v565, 96
        %v569 = vpop.permute.xlu0 %568
        %v571 = vmul.f32 %v566, %v569
        %v572 = vmul.f32 %v554, %v511
        %v573 = vadd.f32 %v571, %v572
        %575 = vrot.lane.b32.xlu0 %v573, 96
        %v576 = vpop.permute.xlu0 %575
        %578 = vst.msk [vmem:[#allocation3 + $0x2] sm:$0x1] %vm453, %v576
        %v579 = vld [vmem:[%s296 + $0x3] sm:$0x1]
        %v580 = vsel %vm367, %v579, %v573
        %v581 = vpack.c.bf16 %v580, %v580
        %v583 = vsel %vm394, %v581, 0
        %585 = vmatpush.bf16.msra.mxu0 0
        %586 = vmatpush.bf16.msra.mxu0 0
        %587 = vmatpush.bf16.msra.mxu0 0
        %588 = vmatpush.bf16.msra.mxu0 0
        %589 = vmatpush.bf16.msra.mxu0 %v389
        %590 = vmatpush.bf16.msra.mxu0 %v388
        %591 = vmatpush.bf16.msra.mxu0 %v387
        %592 = vmatpush.bf16.msra.mxu0 %v386
        %593 = vmatmul.bf16.gmra.mxu0 %v583
        %v594 = vpop.f32.mrf.mxu0
        %v595 = vadd.f32 %v359, %v594
        %v596 = vpop.f32.mrf.mxu0
        %597 = vdwg.mxu0
        %v598 = vxor.u32 %v595, 2147483648
        %v599 = vmul.f32 %v598, 1.442695
        %v600 = vpow.pop %v599
        %v601 = vadd.f32 %v600, 1.0
        %v602 = vrcp.pop %v601
        %v603 = vmul.f32 %v601, %v602
        %v604 = vsub.f32 1.0, %v603
        %v605 = vmul.f32 %v602, %v604
        %v606 = vadd.f32 %v602, %v605
        %vm607 = vweird.f32 %v601
        %vm608 = vweird.f32 %v602
        %vm609 = vmor %vm607, %vm608
        %v610 = vsel %vm609, %v602, %v606
        %v611 = vand.u32 2147483647, %v601
        %vm612 = vcmp.eq.f32.partialorder %v611, 8.507059e+37
        %v613 = vand.u32 %v601, 2147483648
        %v614 = vor.u32 1.1754944e-38, %v613
        %v615 = vsel %vm612, %v614, %v610
        %v616 = vmul.f32 1.0, %v615
        %618 = vrot.lane.b32.xlu0 %v595, 32
        %v619 = vpop.permute.xlu0 %618
        %v621 = vmul.f32 %v616, %v619
        %623 = vrot.lane.b32.xlu0 %v621, 64
        %v624 = vpop.permute.xlu0 %623
        %v626 = vadd.f32 %v595, %v624
        %v627 = vtanh.pop %v626
        %v628 = vsub.f32 1.0, %v616
        %630 = vrot.lane.b32.xlu0 %v627, 96
        %v631 = vpop.permute.xlu0 %630
        %v633 = vmul.f32 %v628, %v631
        %v634 = vmul.f32 %v616, %v573
        %v635 = vadd.f32 %v633, %v634
        %637 = vrot.lane.b32.xlu0 %v635, 96
        %v638 = vpop.permute.xlu0 %637
        %640 = vst.msk [vmem:[#allocation3 + $0x3] sm:$0x1] %vm453, %v638
        %v641 = vld [vmem:[%s296 + $0x4] sm:$0x1]
        %v642 = vsel %vm367, %v641, %v635
        %v643 = vpack.c.bf16 %v642, %v642
        %v645 = vsel %vm394, %v643, 0
        %647 = vmatpush.bf16.msra.mxu0 0
        %648 = vmatpush.bf16.msra.mxu0 0
        %649 = vmatpush.bf16.msra.mxu0 0
        %650 = vmatpush.bf16.msra.mxu0 0
        %651 = vmatpush.bf16.msra.mxu0 %v389
        %652 = vmatpush.bf16.msra.mxu0 %v388
        %653 = vmatpush.bf16.msra.mxu0 %v387
        %654 = vmatpush.bf16.msra.mxu0 %v386
        %655 = vmatmul.bf16.gmra.mxu0 %v645
        %v656 = vpop.f32.mrf.mxu0
        %v657 = vadd.f32 %v359, %v656
        %v658 = vpop.f32.mrf.mxu0
        %659 = vdwg.mxu0
        %v660 = vxor.u32 %v657, 2147483648
        %v661 = vmul.f32 %v660, 1.442695
        %v662 = vpow.pop %v661
        %v663 = vadd.f32 %v662, 1.0
        %v664 = vrcp.pop %v663
        %v665 = vmul.f32 %v663, %v664
        %v666 = vsub.f32 1.0, %v665
        %v667 = vmul.f32 %v664, %v666
        %v668 = vadd.f32 %v664, %v667
        %vm669 = vweird.f32 %v663
        %vm670 = vweird.f32 %v664
        %vm671 = vmor %vm669, %vm670
        %v672 = vsel %vm671, %v664, %v668
        %v673 = vand.u32 2147483647, %v663
        %vm674 = vcmp.eq.f32.partialorder %v673, 8.507059e+37
        %v675 = vand.u32 %v663, 2147483648
        %v676 = vor.u32 1.1754944e-38, %v675
        %v677 = vsel %vm674, %v676, %v672
        %v678 = vmul.f32 1.0, %v677
        %680 = vrot.lane.b32.xlu0 %v657, 32
        %v681 = vpop.permute.xlu0 %680
        %v683 = vmul.f32 %v678, %v681
        %685 = vrot.lane.b32.xlu0 %v683, 64
        %v686 = vpop.permute.xlu0 %685
        %v688 = vadd.f32 %v657, %v686
        %v689 = vtanh.pop %v688
        %v690 = vsub.f32 1.0, %v678
        %692 = vrot.lane.b32.xlu0 %v689, 96
        %v693 = vpop.permute.xlu0 %692
        %v695 = vmul.f32 %v690, %v693
        %v696 = vmul.f32 %v678, %v635
        %v697 = vadd.f32 %v695, %v696
        %699 = vrot.lane.b32.xlu0 %v697, 96
        %v700 = vpop.permute.xlu0 %699
        %702 = vst.msk [vmem:[#allocation3 + $0x4] sm:$0x1] %vm453, %v700
        %v703 = vld [vmem:[%s296 + $0x5] sm:$0x1]
        %v704 = vsel %vm367, %v703, %v697
        %v705 = vpack.c.bf16 %v704, %v704
        %v707 = vsel %vm394, %v705, 0
        %709 = vmatpush.bf16.msra.mxu0 0
        %710 = vmatpush.bf16.msra.mxu0 0
        %711 = vmatpush.bf16.msra.mxu0 0
        %712 = vmatpush.bf16.msra.mxu0 0
        %713 = vmatpush.bf16.msra.mxu0 %v389
        %714 = vmatpush.bf16.msra.mxu0 %v388
        %715 = vmatpush.bf16.msra.mxu0 %v387
        %716 = vmatpush.bf16.msra.mxu0 %v386
        %717 = vmatmul.bf16.gmra.mxu0 %v707
        %v718 = vpop.f32.mrf.mxu0
        %v719 = vadd.f32 %v359, %v718
        %v720 = vpop.f32.mrf.mxu0
        %721 = vdwg.mxu0
        %v722 = vxor.u32 %v719, 2147483648
        %v723 = vmul.f32 %v722, 1.442695
        %v724 = vpow.pop %v723
        %v725 = vadd.f32 %v724, 1.0
        %v726 = vrcp.pop %v725
        %v727 = vmul.f32 %v725, %v726
        %v728 = vsub.f32 1.0, %v727
        %v729 = vmul.f32 %v726, %v728
        %v730 = vadd.f32 %v726, %v729
        %vm731 = vweird.f32 %v725
        %vm732 = vweird.f32 %v726
        %vm733 = vmor %vm731, %vm732
        %v734 = vsel %vm733, %v726, %v730
        %v735 = vand.u32 2147483647, %v725
        %vm736 = vcmp.eq.f32.partialorder %v735, 8.507059e+37
        %v737 = vand.u32 %v725, 2147483648
        %v738 = vor.u32 1.1754944e-38, %v737
        %v739 = vsel %vm736, %v738, %v734
        %v740 = vmul.f32 1.0, %v739
        %742 = vrot.lane.b32.xlu0 %v719, 32
        %v743 = vpop.permute.xlu0 %742
        %v745 = vmul.f32 %v740, %v743
        %747 = vrot.lane.b32.xlu0 %v745, 64
        %v748 = vpop.permute.xlu0 %747
        %v750 = vadd.f32 %v719, %v748
        %v751 = vtanh.pop %v750
        %v752 = vsub.f32 1.0, %v740
        %754 = vrot.lane.b32.xlu0 %v751, 96
        %v755 = vpop.permute.xlu0 %754
        %v757 = vmul.f32 %v752, %v755
        %v758 = vmul.f32 %v740, %v697
        %v759 = vadd.f32 %v757, %v758
        %761 = vrot.lane.b32.xlu0 %v759, 96
        %v762 = vpop.permute.xlu0 %761
        %764 = vst.msk [vmem:[#allocation3 + $0x5] sm:$0x1] %vm453, %v762
        %v765 = vld [vmem:[%s296 + $0x6] sm:$0x1]
        %v766 = vsel %vm367, %v765, %v759
        %v767 = vpack.c.bf16 %v766, %v766
        %v769 = vsel %vm394, %v767, 0
        %771 = vmatpush.bf16.msra.mxu0 0
        %772 = vmatpush.bf16.msra.mxu0 0
        %773 = vmatpush.bf16.msra.mxu0 0
        %774 = vmatpush.bf16.msra.mxu0 0
        %775 = vmatpush.bf16.msra.mxu0 %v389
        %776 = vmatpush.bf16.msra.mxu0 %v388
        %777 = vmatpush.bf16.msra.mxu0 %v387
        %778 = vmatpush.bf16.msra.mxu0 %v386
        %779 = vmatmul.bf16.gmra.mxu0 %v769
        %v780 = vpop.f32.mrf.mxu0
        %v781 = vadd.f32 %v359, %v780
        %v782 = vpop.f32.mrf.mxu0
        %783 = vdwg.mxu0
        %v784 = vxor.u32 %v781, 2147483648
        %v785 = vmul.f32 %v784, 1.442695
        %v786 = vpow.pop %v785
        %v787 = vadd.f32 %v786, 1.0
        %v788 = vrcp.pop %v787
        %v789 = vmul.f32 %v787, %v788
        %v790 = vsub.f32 1.0, %v789
        %v791 = vmul.f32 %v788, %v790
        %v792 = vadd.f32 %v788, %v791
        %vm793 = vweird.f32 %v787
        %vm794 = vweird.f32 %v788
        %vm795 = vmor %vm793, %vm794
        %v796 = vsel %vm795, %v788, %v792
        %v797 = vand.u32 2147483647, %v787
        %vm798 = vcmp.eq.f32.partialorder %v797, 8.507059e+37
        %v799 = vand.u32 %v787, 2147483648
        %v800 = vor.u32 1.1754944e-38, %v799
        %v801 = vsel %vm798, %v800, %v796
        %v802 = vmul.f32 1.0, %v801
        %804 = vrot.lane.b32.xlu0 %v781, 32
        %v805 = vpop.permute.xlu0 %804
        %v807 = vmul.f32 %v802, %v805
        %809 = vrot.lane.b32.xlu0 %v807, 64
        %v810 = vpop.permute.xlu0 %809
        %v812 = vadd.f32 %v781, %v810
        %v813 = vtanh.pop %v812
        %v814 = vsub.f32 1.0, %v802
        %816 = vrot.lane.b32.xlu0 %v813, 96
        %v817 = vpop.permute.xlu0 %816
        %v819 = vmul.f32 %v814, %v817
        %v820 = vmul.f32 %v802, %v759
        %v821 = vadd.f32 %v819, %v820
        %823 = vrot.lane.b32.xlu0 %v821, 96
        %v824 = vpop.permute.xlu0 %823
        %826 = vst.msk [vmem:[#allocation3 + $0x6] sm:$0x1] %vm453, %v824
        %v827 = vld [vmem:[%s296 + $0x7] sm:$0x1]
        %v828 = vsel %vm367, %v827, %v821
        %v829 = vpack.c.bf16 %v828, %v828
        %v831 = vsel %vm394, %v829, 0
        %833 = vmatpush.bf16.msra.mxu0 0
        %834 = vmatpush.bf16.msra.mxu0 0
        %835 = vmatpush.bf16.msra.mxu0 0
        %836 = vmatpush.bf16.msra.mxu0 0
        %837 = vmatpush.bf16.msra.mxu0 %v389
        %838 = vmatpush.bf16.msra.mxu0 %v388
        %839 = vmatpush.bf16.msra.mxu0 %v387
        %840 = vmatpush.bf16.msra.mxu0 %v386
        %841 = vmatmul.bf16.gmra.mxu0 %v831
        %v842 = vpop.f32.mrf.mxu0
        %v843 = vadd.f32 %v359, %v842
        %v844 = vpop.f32.mrf.mxu0
        %845 = vdwg.mxu0
        %v846 = vxor.u32 %v843, 2147483648
        %v847 = vmul.f32 %v846, 1.442695
        %v848 = vpow.pop %v847
        %v849 = vadd.f32 %v848, 1.0
        %v850 = vrcp.pop %v849
        %v851 = vmul.f32 %v849, %v850
        %v852 = vsub.f32 1.0, %v851
        %v853 = vmul.f32 %v850, %v852
        %v854 = vadd.f32 %v850, %v853
        %vm855 = vweird.f32 %v849
        %vm856 = vweird.f32 %v850
        %vm857 = vmor %vm855, %vm856
        %v858 = vsel %vm857, %v850, %v854
        %v859 = vand.u32 2147483647, %v849
        %vm860 = vcmp.eq.f32.partialorder %v859, 8.507059e+37
        %v861 = vand.u32 %v849, 2147483648
        %v862 = vor.u32 1.1754944e-38, %v861
        %v863 = vsel %vm860, %v862, %v858
        %v864 = vmul.f32 1.0, %v863
        %866 = vrot.lane.b32.xlu0 %v843, 32
        %v867 = vpop.permute.xlu0 %866
        %v869 = vmul.f32 %v864, %v867
        %871 = vrot.lane.b32.xlu0 %v869, 64
        %v872 = vpop.permute.xlu0 %871
        %v874 = vadd.f32 %v843, %v872
        %v875 = vtanh.pop %v874
        %v876 = vsub.f32 1.0, %v864
        %878 = vrot.lane.b32.xlu0 %v875, 96
        %v879 = vpop.permute.xlu0 %878
        %v881 = vmul.f32 %v876, %v879
        %v882 = vmul.f32 %v864, %v821
        %v883 = vadd.f32 %v881, %v882
        %885 = vrot.lane.b32.xlu0 %v883, 96
        %v886 = vpop.permute.xlu0 %885
        %888 = vst.msk [vmem:[#allocation3 + $0x7] sm:$0x1] %vm453, %v886
        %889 = vst.msk [vmem:[#allocation2] sm:$0x1] %vm453, %v886
        %v890 = vld [vmem:[#allocation3] sm:$0xff]
        %v891 = vpack.c.bf16 %v890, %v890
        %v892 = vld [vmem:[#allocation10] sm:$0xf]
        %v893 = vld [vmem:[#allocation10 + $0x4] sm:$0xf]
        %v894 = vld [vmem:[#allocation10 + $0x8] sm:$0xf]
        %v895 = vld [vmem:[#allocation10 + $0xc] sm:$0xf]
        %v896 = vld [vmem:[%s5] sm:$0x1]
        %v898 = vperm.slane %v896, 0
        %v904 = vunpack.c.l.b16 %v892
        %v905 = vunpack.c.l.b16 %v893
        %v906 = vunpack.c.l.b16 %v894
        %v907 = vunpack.c.l.b16 %v895
        %v908 = vpack.c.b16 %v905, %v904
        %v909 = vpack.c.b16 %v907, %v906
        %v913 = vsel %vm367, %v891, 0
        %915 = vmatpush.bf16.msra.mxu0 0
        %916 = vmatpush.bf16.msra.mxu0 0
        %917 = vmatpush.bf16.msra.mxu0 0
        %918 = vmatpush.bf16.msra.mxu0 0
        %919 = vmatpush.bf16.msra.mxu0 0
        %920 = vmatpush.bf16.msra.mxu0 0
        %921 = vmatpush.bf16.msra.mxu0 %v909
        %922 = vmatpush.bf16.msra.mxu0 %v908
        %923 = vmatmul.bf16.gmra.mxu0 %v913
        %v924 = vpop.f32.mrf.mxu0
        %v925 = vadd.f32 %v898, %v924
        %v926 = vpop.f32.mrf.mxu0
        %927 = vdwg.mxu0
        %928 = vmax.xlane.f32.xlu0 %v925
        %v929 = vpop.xlane.xlu0 %928
        %v930 = vsub.f32 %v925, %v929
        %v931 = vmul.f32 %v930, 1.442695
        %v932 = vpow.pop %v931
        %933 = vadd.xlane.f32.xlu0 %v932
        %v934 = vpop.xlane.xlu0 %933
        %v935 = vlog2.pop %v934
        %v936 = vmul.f32 %v935, 0.6931472
        %v937 = vadd.f32 %v936, %v929
        %v938 = vsub.f32 %v925, %v937
        %939 = vst [vmem:[%s340] sm:$0xff] %v938
        %p940 = scmp.eq.s32.totalorder %s28, 1
        // Predicated region
        $region65: #{tpu_custom_call.1} parent=43 // pred_check
          %p941 = pneg %p940
        $region66: #{tpu_custom_call.1} parent=43 // pred_check_branch
          %943 = sbr.rel (%p941) target = $region68
        $region67: #{tpu_custom_call.1} parent=43 // pred_region
          %944 = vst.msk [vmem:[#allocation13] sm:$0x1] %vm453, %v886
        $region68: #{tpu_custom_call.1} parent=43 // pred_fallthru
          _
        %s945 = sand.u32 %s167, 1
        %s946 = scalar_lea.sflag [#allocation6], %s945
        %s947 = sand.u32 %s167, 1
        %s948 = smul.addr %s947, 8
        %s949 = scalar_lea.vmem [#allocation12], %s948
        // Predicated region
        $region69: #{tpu_custom_call.1} parent=43 // pred_check
          %p950 = pneg %p177
        $region70: #{tpu_custom_call.1} parent=43 // pred_check_branch
          %952 = sbr.rel (%p950) target = $region72
        $region71: #{tpu_custom_call.1} parent=43 // pred_region
          %954 = vsyncadd %s946, 0
          %s955 = smul.addr %s28, 8
          %s956 = scalar_lea.hbm %s6, %s955
          %s958 = sshll.u32 %s949, 4
          %s959 = int_to_ptr.vmem [resolvable:$true] %s958
          %s960 = sshll.u32 %s956, 4
          %s961 = int_to_ptr.hbm [resolvable:$true] %s960
          %963 = dma.vmem_to_hbm [thread:$0]  %s959, 128, %s961, %s946
        $region72: #{tpu_custom_call.1} parent=43 // pred_fallthru
          _
        // Predicated region
        $region73: #{tpu_custom_call.1} parent=43 // pred_check
          %p964 = pneg %p198
        $region74: #{tpu_custom_call.1} parent=43 // pred_check_branch
          %966 = sbr.rel (%p964) target = $region76
        $region75: #{tpu_custom_call.1} parent=43 // pred_region
          %968 = vsyncadd [#allocation14], 0
          %s970 = sshll.u32 [#allocation13], 4
          %s971 = int_to_ptr.vmem [resolvable:$true] %s970
          %s972 = sshll.u32 %s7, 4
          %s973 = int_to_ptr.hbm [resolvable:$true] %s972
          %975 = dma.vmem_to_hbm [thread:$0]  %s971, 16, %s973, [#allocation14]
        $region76: #{tpu_custom_call.1} parent=43 // pred_fallthru
          _
        // Predicated region
        $region77: #{tpu_custom_call.1} parent=43 // pred_check
          %p976 = pneg %p198
        $region78: #{tpu_custom_call.1} parent=43 // pred_check_branch
          %978 = sbr.rel (%p976) target = $region80
        $region79: #{tpu_custom_call.1} parent=43 // pred_region
          %980 = dma.done [#allocation14], 16
        $region80: #{tpu_custom_call.1} parent=43 // pred_fallthru
          _
      $region44: #{tpu_custom_call.1} parent=5 // pred_fallthru
        _
      %p981 = scmp.le.s32.totalorder 2, %s23
      // Predicated region
      $region81: #{tpu_custom_call.1} parent=5 // pred_check
        %p982 = pneg %p981
      $region82: #{tpu_custom_call.1} parent=5 // pred_check_branch
        %984 = sbr.rel (%p982) target = $region84
      $region83: #{tpu_custom_call.1} parent=5 // pred_region
        %s985 = ssub.s32 %s23, 2
        // Predicated region
        $region85: #{tpu_custom_call.1} parent=83 // pred_check
          %p986 = pneg %p183
        $region86: #{tpu_custom_call.1} parent=83 // pred_check_branch
          %988 = sbr.rel (%p986) target = $region88
        $region87: #{tpu_custom_call.1} parent=83 // pred_region
          %s989 = sand.u32 %s168, 1
          %s990 = scalar_lea.sflag [#allocation6], %s989
          %s991 = sand.u32 %s168, 1
          %s992 = smul.addr %s991, 8
          %s993 = scalar_lea.vmem [#allocation12], %s992
          %995 = dma.done %s990, 128
        $region88: #{tpu_custom_call.1} parent=83 // pred_fallthru
          _
      $region84: #{tpu_custom_call.1} parent=5 // pred_fallthru
        _
    $region6: #{tpu_custom_call.1} parent=1 // loop_footer
      %s27 = sadd.s32 1, %s23
    $region7: #{tpu_custom_call.1} parent=1 // loop_footer_branch
      %22 = sbr.rel target = $region3
    $region8: #{tpu_custom_call.1} parent=1 // loop_exit
      _
    %996 = vsyncpa [#allocation5], 1
    %s997 = scalar_lea.sflag [#allocation5], 1
    %998 = vsyncpa %s997, 1
    %999 = vsyncpa [#allocation8], 1
    %1000 = vsyncpa [#allocation11], 1
    %1001 = vsyncpa [#allocation6], 1
    %s1002 = scalar_lea.sflag [#allocation6], 1
    %1003 = vsyncpa %s1002, 1
    %1004 = vsyncpa [#allocation14], 1

</llo_original>
